<compile_context>
chip_gen: v6e
topology: v6e:2x2x1
jax: 0.10.0
libtpu: 0.0.40
codegen_flags: <defaults>
</compile_context>

<pallas_src>
import functools

import jax
import jax.numpy as jnp
from jax.experimental import pallas as pl
from jax.experimental.pallas import tpu as pltpu

_EPS = 1e-5


def _round_up(v, m):
    return ((v + m - 1) // m) * m


def _fold_bn(gamma, beta, mean, var, eps=_EPS):
    scale = (gamma / jnp.sqrt(var + eps)).astype(jnp.float32)
    bias = (beta - mean * scale).astype(jnp.float32)
    return scale, bias


def _pad2(a, rows, cols):
    return jnp.pad(a, ((0, rows - a.shape[0]), (0, cols - a.shape[1])))


# =============================================================================
# Fused kernel:
#   1x1 expand (BN folded, relu6) -> 3x3 depthwise stride s (BN folded, relu6)
#   -> 1x1 project (BN folded) -> (+ residual) -> (+ InstanceNorm)
# Grid: (N, output-row tiles).  The output block (one whole image) is resident
# in VMEM across the row tiles; the Cmid-wide intermediate only ever exists for
# the current row tile.
# =============================================================================
def _bottleneck_fused_kernel(x_ref, w1_ref, b1_ref, wdw_ref, b2_ref,
                             w3_ref, b3_ref, ing_ref, inb_ref,
                             o_ref, sum_ref, ssq_ref, *,
                             stride, th, h_in, w_in, w_valid,
                             use_residual, use_in, eps, mxu_dtype):
    s = stride
    t = pl.program_id(1)
    n_tiles = pl.num_programs(1)
    _, _, _, _, wh, cp = x_ref.shape            # per-phase padded input block
    _, ho, wop, co = o_ref.shape                # per-image output block (VMEM-resident)
    cm = w1_ref.shape[1]
    nrow = th + 2 // s                          # input phase rows needed per tile

    # Clamped row start: a ragged last tile recomputes a few rows, which is
    # harmless (identical values written to identical destinations).
    r0 = jnp.minimum(t * th, ho - th)

    if use_in:
        @pl.when(t == 0)
        def _init_stats():
            sum_ref[...] = jnp.zeros_like(sum_ref)
            ssq_ref[...] = jnp.zeros_like(ssq_ref)

    w1 = w1_ref[...]
    b1 = b1_ref[...]
    wdw = wdw_ref[...]

    # ---- stage 1: 1x1 expand (BN folded into w1) + relu6, per stride phase ----
    m_ph = {}
    for a in range(s):
        for b in range(s):
            xin = x_ref[0, a, b, pl.ds(r0, nrow), :, :]              # (nrow, wh, cp)
            mm = jnp.dot(xin.reshape(nrow * wh, cp).astype(mxu_dtype), w1,
                         preferred_element_type=jnp.float32)
            mm = jnp.clip(mm + b1, 0.0, 6.0).reshape(nrow, wh, cm)
            # The depthwise conv zero-pads AFTER conv1+BN+relu6, so positions that
            # correspond to spatial padding must be 0, not relu6(bias).
            prow = (r0 + jax.lax.broadcasted_iota(jnp.int32, (nrow, 1, 1), 0)) * s + a
            pcol = jax.lax.broadcasted_iota(jnp.int32, (1, wh, 1), 1) * s + b
            interior = (prow >= 1) & (prow <= h_in) & (pcol >= 1) & (pcol <= w_in)
            m_ph[(a, b)] = jnp.where(interior, mm, 0.0)

    # ---- stage 2: 3x3 depthwise at stride s via 9 shifted taps (BN folded) ----
    acc = jnp.zeros((th, wop, cm), jnp.float32)
    for kh in range(3):
        pa, ro = kh % s, kh // s
        for kw in range(3):
            pb, cofs = kw % s, kw // s
            tap = m_ph[(pa, pb)][ro:ro + th, cofs:cofs + wop, :]
            acc = acc + tap * wdw[kh, kw, :].reshape(1, 1, cm)
    d = jnp.clip(acc + b2_ref[...].reshape(1, 1, cm), 0.0, 6.0)

    # ---- stage 3: 1x1 project (BN folded into w3) + residual ----
    y = jnp.dot(d.reshape(th * wop, cm).astype(mxu_dtype), w3_ref[...],
                preferred_element_type=jnp.float32)
    y = (y + b3_ref[...]).reshape(th, wop, co)
    if use_residual:                                # stride == 1 and Cin == Cout
        res = x_ref[0, 0, 0, pl.ds(r0 + 1, th), pl.ds(1, wop), :]
        y = y + res.astype(jnp.float32)
    o_ref[0, pl.ds(r0, th), :, :] = y.astype(o_ref.dtype)

    # ---- InstanceNorm: per-(n, c) stats accumulated tile-by-tile; the output
    #      block is VMEM-resident, so normalize it in place at the last tile. ----
    if use_in:
        new_rows = (r0 + jax.lax.broadcasted_iota(jnp.int32, (th, 1, 1), 0)) >= t * th
        valid_cols = jax.lax.broadcasted_iota(jnp.int32, (1, wop, 1), 1) < w_valid
        sel = jnp.where(new_rows & valid_cols, y, 0.0).reshape(th * wop, co)
        sum_ref[...] += jnp.sum(sel, axis=0, keepdims=True)
        ssq_ref[...] += jnp.sum(sel * sel, axis=0, keepdims=True)

        @pl.when(t == n_tiles - 1)
        def _finalize():
            cnt = float(ho * w_valid)
            mean = sum_ref[...] / cnt
            var = jnp.maximum(ssq_ref[...] / cnt - mean * mean, 0.0)
            scale = jax.lax.rsqrt(var + eps) * ing_ref[...]
            shift = inb_ref[...] - mean * scale

            def _norm_row(i, carry):
                row = o_ref[0, pl.ds(i, 1), :, :].astype(jnp.float32)
                o_ref[0, pl.ds(i, 1), :, :] = (row * scale + shift).astype(o_ref.dtype)
                return carry

            jax.lax.fori_loop(0, ho, _norm_row, 0)


# =============================================================================
# Wrapper: NCHW in, NCHW out (PyTorch convention).
# =============================================================================
def bottleneck_forward(x_nchw, p, stride, use_in, *, row_tile=None,
                       mxu_dtype=jnp.float32):
    N, Cin, H, W = x_nchw.shape
    Cmid = p["w1"].shape[1]
    Cout = p["w3"].shape[1]
    s = int(stride)
    assert s in (1, 2), "MobileNetV2 bottlenecks use stride 1 or 2"
    use_residual = (s == 1) and (Cin == Cout)

    Ho = (H - 1) // s + 1
    Wo = (W - 1) // s + 1
    halo = 2 // s
    Cp = _round_up(Cin, 128)                     # lane-dense channel padding
    Cm = _round_up(Cmid, 128)
    Co = _round_up(Cout, 128)
    Wop = _round_up(Wo, 8)                       # sublane-aligned output width
    Wh = _round_up(Wop + halo, 8)                # per-phase padded input width
    Hh = Ho + halo                               # per-phase padded input rows

    # ---- fold BN scales into the conv weights (done once on the host side) ----
    s1, b1 = _fold_bn(p["bn1_g"], p["bn1_b"], p["bn1_m"], p["bn1_v"])
    s2, b2 = _fold_bn(p["bn2_g"], p["bn2_b"], p["bn2_m"], p["bn2_v"])
    s3, b3 = _fold_bn(p["bn3_g"], p["bn3_b"], p["bn3_m"], p["bn3_v"])
    w1p = _pad2((p["w1"] * s1[None, :]).astype(mxu_dtype), Cp, Cm)
    w3p = _pad2((p["w3"] * s3[None, :]).astype(mxu_dtype), Cm, Co)
    wdwp = jnp.pad((p["wdw"] * s2[None, None, :]).astype(jnp.float32),
                   ((0, 0), (0, 0), (0, Cm - Cmid)))
    b1p = _pad2(b1[None, :], 1, Cm)
    b2p = _pad2(b2[None, :], 1, Cm)
    b3p = _pad2(b3[None, :], 1, Co)
    if use_in:
        ingp = _pad2(p["in_g"].astype(jnp.float32)[None, :], 1, Co)
        inbp = _pad2(p["in_b"].astype(jnp.float32)[None, :], 1, Co)
    else:
        ingp = jnp.zeros((1, Co), jnp.float32)
        inbp = jnp.zeros((1, Co), jnp.float32)

    # ---- input: NHWC, zero-pad (spatial + channels), split into stride phases so
    #      every in-kernel access is a contiguous slice ----
    # TODO(synk): in a full backbone keep activations NHWC end-to-end and drop this
    # boundary transpose (it is one extra HBM pass per block).
    x = jnp.transpose(x_nchw, (0, 2, 3, 1)).astype(jnp.float32)
    Hp, Wp = s * Hh, s * Wh
    xp = jnp.pad(x, ((0, 0), (1, Hp - H - 1), (1, Wp - W - 1), (0, Cp - Cin)))
    xph = xp.reshape(N, Hh, s, Wh, s, Cp).transpose(0, 2, 4, 1, 3, 5)  # (N,s,s,Hh,Wh,Cp)

    # ---- output-row tile: bound the Cmid-wide per-tile intermediates (~8 MB) ----
    if row_tile is None:
        per_row = 4 * (s * s * Wh * Cm + 3 * Wop * Cm + 2 * Wop * Co)
        row_tile = max(1, (8 * 2 ** 20) // per_row)
    th = int(min(row_tile, Ho))
    n_tiles = int(pl.cdiv(Ho, th))

    # rough VMEM budget (double-buffered blocks + per-tile intermediates) + headroom
    est = 4 * (2 * (s * s * Hh * Wh * Cp + Ho * Wop * Co + Cp * Cm + Cm * Co
                    + 12 * Cm + 4 * Co)
               + (th + halo) * s * s * Wh * Cm + 3 * th * Wop * Cm
               + 2 * th * Wop * Co)
    vmem_limit = int(min(max(2 * est, 32 * 2 ** 20), 64 * 2 ** 20))

    kernel = functools.partial(
        _bottleneck_fused_kernel, stride=s, th=th, h_in=H, w_in=W, w_valid=Wo,
        use_residual=use_residual, use_in=use_in, eps=_EPS, mxu_dtype=mxu_dtype)

    out = pl.pallas_call(
        kernel,
        out_shape=jax.ShapeDtypeStruct((N, Ho, Wop, Co), jnp.float32),
        grid_spec=pltpu.PrefetchScalarGridSpec(
            num_scalar_prefetch=0,
            grid=(N, n_tiles),
            in_specs=[
                pl.BlockSpec((1, s, s, Hh, Wh, Cp),
                             lambda n, t: (n, 0, 0, 0, 0, 0)),
                pl.BlockSpec((Cp, Cm), lambda n, t: (0, 0)),
                pl.BlockSpec((1, Cm), lambda n, t: (0, 0)),
                pl.BlockSpec((3, 3, Cm), lambda n, t: (0, 0, 0)),
                pl.BlockSpec((1, Cm), lambda n, t: (0, 0)),
                pl.BlockSpec((Cm, Co), lambda n, t: (0, 0)),
                pl.BlockSpec((1, Co), lambda n, t: (0, 0)),
                pl.BlockSpec((1, Co), lambda n, t: (0, 0)),
                pl.BlockSpec((1, Co), lambda n, t: (0, 0)),
            ],
            out_specs=pl.BlockSpec((1, Ho, Wop, Co), lambda n, t: (n, 0, 0, 0)),
            scratch_shapes=[pltpu.VMEM((1, Co), jnp.float32),
                            pltpu.VMEM((1, Co), jnp.float32)],
        ),
        compiler_params=pltpu.CompilerParams(
            dimension_semantics=("parallel", "arbitrary"),
            vmem_limit_bytes=vmem_limit),
    )(xph, w1p, b1p, wdwp, b2p, w3p, b3p, ingp, inbp)

    out = out[:, :, :Wo, :Cout]                   # strip width / channel padding
    return jnp.transpose(out, (0, 3, 1, 2))       # back to NCHW


# =============================================================================
# Pure-JAX reference (mirrors the PyTorch module, eval-mode BN)
# =============================================================================
def bottleneck_reference(x, p, stride, use_in, eps=_EPS):
    def conv2d(x, w_oihw, stride=1, padding="VALID", groups=1):
        return jax.lax.conv_general_dilated(
            x, w_oihw, window_strides=(stride, stride), padding=padding,
            dimension_numbers=("NCHW", "OIHW", "NCHW"),
            feature_group_count=groups)

    def bn(x, g, b, m, v):
        s = g / jnp.sqrt(v + eps)
        return x * s[None, :, None, None] + (b - m * s)[None, :, None, None]

    relu6 = lambda t: jnp.clip(t, 0.0, 6.0)

    w1 = jnp.transpose(p["w1"])[:, :, None, None]               # (Cmid, Cin, 1, 1)
    m = relu6(bn(conv2d(x, w1), p["bn1_g"], p["bn1_b"], p["bn1_m"], p["bn1_v"]))
    wdw = jnp.transpose(p["wdw"], (2, 0, 1))[:, None, :, :]     # (Cmid, 1, 3, 3)
    m = relu6(bn(conv2d(m, wdw, stride=stride, padding=((1, 1), (1, 1)),
                        groups=m.shape[1]),
                 p["bn2_g"], p["bn2_b"], p["bn2_m"], p["bn2_v"]))
    w3 = jnp.transpose(p["w3"])[:, :, None, None]               # (Cout, Cmid, 1, 1)
    m = bn(conv2d(m, w3), p["bn3_g"], p["bn3_b"], p["bn3_m"], p["bn3_v"])
    out = x + m if (stride == 1 and x.shape[1] == m.shape[1]) else m
    if use_in:
        mu = out.mean(axis=(2, 3), keepdims=True)
        var = out.var(axis=(2, 3), keepdims=True)
        out = (out - mu) / jnp.sqrt(var + eps)
        out = out * p["in_g"][None, :, None, None] + p["in_b"][None, :, None, None]
    return out


if __name__ == "__main__":
    root = jax.random.PRNGKey(0)
    f32 = jnp.float32

    def make_params(key, cin, cmid, cout):
        ks = jax.random.split(key, 17)
        return {
            "w1": 0.2 * jax.random.normal(ks[0], (cin, cmid), f32),
            "bn1_g": 1.0 + 0.1 * jax.random.normal(ks[1], (cmid,), f32),
            "bn1_b": 0.1 * jax.random.normal(ks[2], (cmid,), f32),
            "bn1_m": 0.1 * jax.random.normal(ks[3], (cmid,), f32),
            "bn1_v": 1.0 + 0.2 * jax.random.uniform(ks[4], (cmid,), f32),
            "wdw": 0.2 * jax.random.normal(ks[5], (3, 3, cmid), f32),
            "bn2_g": 1.0 + 0.1 * jax.random.normal(ks[6], (cmid,), f32),
            "bn2_b": 0.1 * jax.random.normal(ks[7], (cmid,), f32),
            "bn2_m": 0.1 * jax.random.normal(ks[8], (cmid,), f32),
            "bn2_v": 1.0 + 0.2 * jax.random.uniform(ks[9], (cmid,), f32),
            "w3": 0.2 * jax.random.normal(ks[10], (cmid, cout), f32),
            "bn3_g": 1.0 + 0.1 * jax.random.normal(ks[11], (cout,), f32),
            "bn3_b": 0.1 * jax.random.normal(ks[12], (cout,), f32),
            "bn3_m": 0.1 * jax.random.normal(ks[13], (cout,), f32),
            "bn3_v": 1.0 + 0.2 * jax.random.uniform(ks[14], (cout,), f32),
            "in_g": 1.0 + 0.1 * jax.random.normal(ks[15], (cout,), f32),
            "in_b": 0.1 * jax.random.normal(ks[16], (cout,), f32),
        }

    def check(name, x, p, stride, use_in, tol, **kw):
        out = jax.block_until_ready(bottleneck_forward(x, p, stride, use_in, **kw))
        ref = bottleneck_reference(x, p, stride, use_in)
        assert out.shape == ref.shape, (name, out.shape, ref.shape)
        err = float(jnp.max(jnp.abs(out - ref)))
        assert err < tol, (name, err)

    # Bottleneck(4, 4, expansion_factor=2, stride=1, IN=True): residual + InstanceNorm.
    p1 = make_params(jax.random.fold_in(root, 1), 4, 8, 4)
    x1 = jax.random.normal(jax.random.fold_in(root, 2), (2, 4, 16, 16), f32)
    check("stride1_residual_IN", x1, p1, stride=1, use_in=True, tol=1e-3, row_tile=6)

    # Bottleneck(4, 8, expansion_factor=2, stride=2, IN=False): strided, no residual.
    p2 = make_params(jax.random.fold_in(root, 3), 4, 8, 8)
    x2 = jax.random.normal(jax.random.fold_in(root, 4), (2, 4, 16, 16), f32)
    check("stride2_no_IN", x2, p2, stride=2, use_in=False, tol=1e-3, row_tile=4)

    # Same block with bf16 MXU operands (v6e/v7x path): f32 accumulation + f32 epilogue.
    check("stride1_bf16_mxu", x1, p1, stride=1, use_in=True, tol=5e-1,
          row_tile=6, mxu_dtype=jnp.bfloat16)

    print("KERNEL_OK")
</pallas_src>

<mosaic_0001>
module attributes {stable_mosaic.version = 11 : i64} {
  func.func @_bottleneck_fused_kernel(%arg0: i32, %arg1: i32, %arg2: memref<1x1x1x18x24x128xf32, #tpu.memory_space<vmem>>, %arg3: memref<128x128xf32, #tpu.memory_space<vmem>>, %arg4: memref<1x128xf32, #tpu.memory_space<vmem>>, %arg5: memref<3x3x128xf32, #tpu.memory_space<vmem>>, %arg6: memref<1x128xf32, #tpu.memory_space<vmem>>, %arg7: memref<128x128xf32, #tpu.memory_space<vmem>>, %arg8: memref<1x128xf32, #tpu.memory_space<vmem>>, %arg9: memref<1x128xf32, #tpu.memory_space<vmem>>, %arg10: memref<1x128xf32, #tpu.memory_space<vmem>>, %arg11: memref<1x16x16x128xf32, #tpu.memory_space<vmem>>, %arg12: memref<1x128xf32, #tpu.memory_space<vmem>>, %arg13: memref<1x128xf32, #tpu.memory_space<vmem>>) attributes {dimension_semantics = [#tpu.dimension_semantics<parallel>, #tpu.dimension_semantics<arbitrary>], iteration_bounds = array<i64: 2, 3>, scalar_prefetch = 0 : i64, scratch_operands = 2 : i64, tpu.core_type = #tpu.core_type<tc>, window_params = [{transform_indices = @transform_0, window_bounds = array<i64: 1, 1, 1, 18, 24, 128>}, {pipeline_mode = #tpu.pipeline_mode<synchronous>, transform_indices = @transform_1, window_bounds = array<i64: 128, 128>}, {pipeline_mode = #tpu.pipeline_mode<synchronous>, transform_indices = @transform_2, window_bounds = array<i64: 1, 128>}, {pipeline_mode = #tpu.pipeline_mode<synchronous>, transform_indices = @transform_3, window_bounds = array<i64: 3, 3, 128>}, {pipeline_mode = #tpu.pipeline_mode<synchronous>, transform_indices = @transform_4, window_bounds = array<i64: 1, 128>}, {pipeline_mode = #tpu.pipeline_mode<synchronous>, transform_indices = @transform_5, window_bounds = array<i64: 128, 128>}, {pipeline_mode = #tpu.pipeline_mode<synchronous>, transform_indices = @transform_6, window_bounds = array<i64: 1, 128>}, {pipeline_mode = #tpu.pipeline_mode<synchronous>, transform_indices = @transform_7, window_bounds = array<i64: 1, 128>}, {pipeline_mode = #tpu.pipeline_mode<synchronous>, transform_indices = @transform_8, window_bounds = array<i64: 1, 128>}, {transform_indices = @transform_9, window_bounds = array<i64: 1, 16, 16, 128>}]} {
    %c6_i32 = arith.constant 6 : i32
    %0 = arith.muli %arg1, %c6_i32 : i32
    %c10_i32 = arith.constant 10 : i32
    %1 = arith.minsi %0, %c10_i32 : i32
    %c0_i32 = arith.constant 0 : i32
    %2 = arith.cmpi eq, %arg1, %c0_i32 : i32
    %3 = arith.extui %2 : i1 to i32
    %c0_i32_0 = arith.constant 0 : i32
    %4 = arith.cmpi ne, %3, %c0_i32_0 : i32
    scf.if %4 {
      %cst_53 = arith.constant 0.000000e+00 : f32
      %169 = vector.broadcast %cst_53 : f32 to vector<1x128xf32>
      %c0_54 = arith.constant 0 : index
      %c0_55 = arith.constant 0 : index
      %170 = vector.load %arg12[%c0_54, %c0_55] : memref<1x128xf32, #tpu.memory_space<vmem>>, vector<1x128xf32>
      tpu.vector_store %arg12[%c0_54, %c0_55], %169 {strides = array<i32>} : memref<1x128xf32, #tpu.memory_space<vmem>>, vector<1x128xf32>,
      %cst_56 = arith.constant 0.000000e+00 : f32
      %171 = vector.broadcast %cst_56 : f32 to vector<1x128xf32>
      %c0_57 = arith.constant 0 : index
      %c0_58 = arith.constant 0 : index
      %172 = vector.load %arg13[%c0_57, %c0_58] : memref<1x128xf32, #tpu.memory_space<vmem>>, vector<1x128xf32>
      tpu.vector_store %arg13[%c0_57, %c0_58], %171 {strides = array<i32>} : memref<1x128xf32, #tpu.memory_space<vmem>>, vector<1x128xf32>,
    } else {
    }
    %c0 = arith.constant 0 : index
    %c0_1 = arith.constant 0 : index
    %5 = vector.load %arg3[%c0, %c0_1] : memref<128x128xf32, #tpu.memory_space<vmem>>, vector<128x128xf32>
    %c0_2 = arith.constant 0 : index
    %c0_3 = arith.constant 0 : index
    %6 = vector.load %arg4[%c0_2, %c0_3] : memref<1x128xf32, #tpu.memory_space<vmem>>, vector<1x128xf32>
    %c0_4 = arith.constant 0 : index
    %c0_5 = arith.constant 0 : index
    %c0_6 = arith.constant 0 : index
    %7 = vector.load %arg5[%c0_4, %c0_5, %c0_6] : memref<3x3x128xf32, #tpu.memory_space<vmem>>, vector<3x3x128xf32>
    %c0_7 = arith.constant 0 : index
    %c0_8 = arith.constant 0 : index
    %c0_9 = arith.constant 0 : index
    %8 = arith.index_cast %1 : i32 to index
    %c0_10 = arith.constant 0 : index
    %c0_11 = arith.constant 0 : index
    %9 = vector.load %arg2[%c0_7, %c0_8, %c0_9, %8, %c0_10, %c0_11] : memref<1x1x1x18x24x128xf32, #tpu.memory_space<vmem>>, vector<1x1x1x8x24x128xf32>
    %10 = vector.shape_cast %9 : vector<1x1x1x8x24x128xf32> to vector<8x24x128xf32>
    %11 = vector.shape_cast %10 : vector<8x24x128xf32> to vector<192x128xf32>
    %cst = arith.constant dense<0.000000e+00> : vector<192x128xf32>
    %12 = tpu.matmul %11, %5, %cst {dimension_numbers = #tpu.dot_dimension_numbers<[1], [0], [0], [1], [0, 0, 1, 1], [], []>} : vector<192x128xf32>, vector<128x128xf32>, vector<192x128xf32> -> vector<192x128xf32>
    %13 = vector.broadcast %6 : vector<1x128xf32> to vector<192x128xf32>
    %14 = arith.addf %12, %13 : vector<192x128xf32>
    %cst_12 = arith.constant 0.000000e+00 : f32
    %cst_13 = arith.constant 6.000000e+00 : f32
    %15 = vector.broadcast %cst_12 : f32 to vector<192x128xf32>
    %16 = arith.maximumf %15, %14 : vector<192x128xf32>
    %17 = vector.broadcast %cst_13 : f32 to vector<192x128xf32>
    %18 = arith.minimumf %17, %16 : vector<192x128xf32>
    %19 = vector.shape_cast %18 : vector<192x128xf32> to vector<8x24x128xf32>
    %20 = tpu.iota {dimensions = array<i32: 0>} : vector<8x1x1xi32>
    %21 = vector.broadcast %1 : i32 to vector<8x1x1xi32>
    %22 = arith.addi %21, %20 : vector<8x1x1xi32>
    %c1_i32 = arith.constant 1 : i32
    %23 = vector.broadcast %c1_i32 : i32 to vector<8x1x1xi32>
    %24 = arith.muli %22, %23 : vector<8x1x1xi32>
    %c0_i32_14 = arith.constant 0 : i32
    %25 = vector.broadcast %c0_i32_14 : i32 to vector<8x1x1xi32>
    %26 = arith.addi %24, %25 : vector<8x1x1xi32>
    %27 = tpu.iota {dimensions = array<i32: 1>} : vector<1x24x1xi32>
    %c1_i32_15 = arith.constant 1 : i32
    %28 = vector.broadcast %c1_i32_15 : i32 to vector<1x24x1xi32>
    %29 = arith.muli %27, %28 : vector<1x24x1xi32>
    %c0_i32_16 = arith.constant 0 : i32
    %30 = vector.broadcast %c0_i32_16 : i32 to vector<1x24x1xi32>
    %31 = arith.addi %29, %30 : vector<1x24x1xi32>
    %c1_i32_17 = arith.constant 1 : i32
    %32 = vector.broadcast %c1_i32_17 : i32 to vector<8x1x1xi32>
    %33 = arith.cmpi sge, %26, %32 : vector<8x1x1xi32>
    %c16_i32 = arith.constant 16 : i32
    %34 = vector.broadcast %c16_i32 : i32 to vector<8x1x1xi32>
    %35 = arith.cmpi sle, %26, %34 : vector<8x1x1xi32>
    %36 = arith.andi %33, %35 : vector<8x1x1xi1>
    %c1_i32_18 = arith.constant 1 : i32
    %37 = vector.broadcast %c1_i32_18 : i32 to vector<1x24x1xi32>
    %38 = arith.cmpi sge, %31, %37 : vector<1x24x1xi32>
    %39 = vector.broadcast %36 : vector<8x1x1xi1> to vector<8x24x1xi1>
    %40 = vector.broadcast %38 : vector<1x24x1xi1> to vector<8x24x1xi1>
    %41 = arith.andi %39, %40 : vector<8x24x1xi1>
    %c16_i32_19 = arith.constant 16 : i32
    %42 = vector.broadcast %c16_i32_19 : i32 to vector<1x24x1xi32>
    %43 = arith.cmpi sle, %31, %42 : vector<1x24x1xi32>
    %44 = vector.broadcast %43 : vector<1x24x1xi1> to vector<8x24x1xi1>
    %45 = arith.andi %41, %44 : vector<8x24x1xi1>
    %cst_20 = arith.constant 0.000000e+00 : f32
    %46 = vector.shape_cast %45 : vector<8x24x1xi1> to vector<8x24x1xi1>
    %47 = vector.broadcast %46 : vector<8x24x1xi1> to vector<8x24x128xi1>
    %48 = vector.broadcast %cst_20 : f32 to vector<8x24x128xf32>
    %49 = arith.select %47, %19, %48 : vector<8x24x128xi1>, vector<8x24x128xf32>
    %cst_21 = arith.constant 0.000000e+00 : f32
    %50 = vector.broadcast %cst_21 : f32 to vector<6x16x128xf32>
    %51 = vector.extract_strided_slice %49 {offsets = [0, 0, 0], sizes = [6, 16, 128], strides = [1, 1, 1]} : vector<8x24x128xf32> to vector<6x16x128xf32>
    %52 = vector.extract_strided_slice %7 {offsets = [0, 0, 0], sizes = [1, 1, 128], strides = [1, 1, 1]} : vector<3x3x128xf32> to vector<1x1x128xf32>
    %53 = vector.shape_cast %52 : vector<1x1x128xf32> to vector<128xf32>
    %54 = vector.shape_cast %53 : vector<128xf32> to vector<1x1x128xf32>
    %55 = vector.broadcast %54 : vector<1x1x128xf32> to vector<6x16x128xf32>
    %56 = arith.mulf %51, %55 : vector<6x16x128xf32>
    %57 = arith.addf %50, %56 : vector<6x16x128xf32>
    %58 = vector.extract_strided_slice %49 {offsets = [0, 1, 0], sizes = [6, 16, 128], strides = [1, 1, 1]} : vector<8x24x128xf32> to vector<6x16x128xf32>
    %59 = vector.extract_strided_slice %7 {offsets = [0, 1, 0], sizes = [1, 1, 128], strides = [1, 1, 1]} : vector<3x3x128xf32> to vector<1x1x128xf32>
    %60 = vector.shape_cast %59 : vector<1x1x128xf32> to vector<128xf32>
    %61 = vector.shape_cast %60 : vector<128xf32> to vector<1x1x128xf32>
    %62 = vector.broadcast %61 : vector<1x1x128xf32> to vector<6x16x128xf32>
    %63 = arith.mulf %58, %62 : vector<6x16x128xf32>
    %64 = arith.addf %57, %63 : vector<6x16x128xf32>
    %65 = vector.extract_strided_slice %49 {offsets = [0, 2, 0], sizes = [6, 16, 128], strides = [1, 1, 1]} : vector<8x24x128xf32> to vector<6x16x128xf32>
    %66 = vector.extract_strided_slice %7 {offsets = [0, 2, 0], sizes = [1, 1, 128], strides = [1, 1, 1]} : vector<3x3x128xf32> to vector<1x1x128xf32>
    %67 = vector.shape_cast %66 : vector<1x1x128xf32> to vector<128xf32>
    %68 = vector.shape_cast %67 : vector<128xf32> to vector<1x1x128xf32>
    %69 = vector.broadcast %68 : vector<1x1x128xf32> to vector<6x16x128xf32>
    %70 = arith.mulf %65, %69 : vector<6x16x128xf32>
    %71 = arith.addf %64, %70 : vector<6x16x128xf32>
    %72 = vector.extract_strided_slice %49 {offsets = [1, 0, 0], sizes = [6, 16, 128], strides = [1, 1, 1]} : vector<8x24x128xf32> to vector<6x16x128xf32>
    %73 = vector.extract_strided_slice %7 {offsets = [1, 0, 0], sizes = [1, 1, 128], strides = [1, 1, 1]} : vector<3x3x128xf32> to vector<1x1x128xf32>
    %74 = vector.shape_cast %73 : vector<1x1x128xf32> to vector<128xf32>
    %75 = vector.shape_cast %74 : vector<128xf32> to vector<1x1x128xf32>
    %76 = vector.broadcast %75 : vector<1x1x128xf32> to vector<6x16x128xf32>
    %77 = arith.mulf %72, %76 : vector<6x16x128xf32>
    %78 = arith.addf %71, %77 : vector<6x16x128xf32>
    %79 = vector.extract_strided_slice %49 {offsets = [1, 1, 0], sizes = [6, 16, 128], strides = [1, 1, 1]} : vector<8x24x128xf32> to vector<6x16x128xf32>
    %80 = vector.extract_strided_slice %7 {offsets = [1, 1, 0], sizes = [1, 1, 128], strides = [1, 1, 1]} : vector<3x3x128xf32> to vector<1x1x128xf32>
    %81 = vector.shape_cast %80 : vector<1x1x128xf32> to vector<128xf32>
    %82 = vector.shape_cast %81 : vector<128xf32> to vector<1x1x128xf32>
    %83 = vector.broadcast %82 : vector<1x1x128xf32> to vector<6x16x128xf32>
    %84 = arith.mulf %79, %83 : vector<6x16x128xf32>
    %85 = arith.addf %78, %84 : vector<6x16x128xf32>
    %86 = vector.extract_strided_slice %49 {offsets = [1, 2, 0], sizes = [6, 16, 128], strides = [1, 1, 1]} : vector<8x24x128xf32> to vector<6x16x128xf32>
    %87 = vector.extract_strided_slice %7 {offsets = [1, 2, 0], sizes = [1, 1, 128], strides = [1, 1, 1]} : vector<3x3x128xf32> to vector<1x1x128xf32>
    %88 = vector.shape_cast %87 : vector<1x1x128xf32> to vector<128xf32>
    %89 = vector.shape_cast %88 : vector<128xf32> to vector<1x1x128xf32>
    %90 = vector.broadcast %89 : vector<1x1x128xf32> to vector<6x16x128xf32>
    %91 = arith.mulf %86, %90 : vector<6x16x128xf32>
    %92 = arith.addf %85, %91 : vector<6x16x128xf32>
    %93 = vector.extract_strided_slice %49 {offsets = [2, 0, 0], sizes = [6, 16, 128], strides = [1, 1, 1]} : vector<8x24x128xf32> to vector<6x16x128xf32>
    %94 = vector.extract_strided_slice %7 {offsets = [2, 0, 0], sizes = [1, 1, 128], strides = [1, 1, 1]} : vector<3x3x128xf32> to vector<1x1x128xf32>
    %95 = vector.shape_cast %94 : vector<1x1x128xf32> to vector<128xf32>
    %96 = vector.shape_cast %95 : vector<128xf32> to vector<1x1x128xf32>
    %97 = vector.broadcast %96 : vector<1x1x128xf32> to vector<6x16x128xf32>
    %98 = arith.mulf %93, %97 : vector<6x16x128xf32>
    %99 = arith.addf %92, %98 : vector<6x16x128xf32>
    %100 = vector.extract_strided_slice %49 {offsets = [2, 1, 0], sizes = [6, 16, 128], strides = [1, 1, 1]} : vector<8x24x128xf32> to vector<6x16x128xf32>
    %101 = vector.extract_strided_slice %7 {offsets = [2, 1, 0], sizes = [1, 1, 128], strides = [1, 1, 1]} : vector<3x3x128xf32> to vector<1x1x128xf32>
    %102 = vector.shape_cast %101 : vector<1x1x128xf32> to vector<128xf32>
    %103 = vector.shape_cast %102 : vector<128xf32> to vector<1x1x128xf32>
    %104 = vector.broadcast %103 : vector<1x1x128xf32> to vector<6x16x128xf32>
    %105 = arith.mulf %100, %104 : vector<6x16x128xf32>
    %106 = arith.addf %99, %105 : vector<6x16x128xf32>
    %107 = vector.extract_strided_slice %49 {offsets = [2, 2, 0], sizes = [6, 16, 128], strides = [1, 1, 1]} : vector<8x24x128xf32> to vector<6x16x128xf32>
    %108 = vector.extract_strided_slice %7 {offsets = [2, 2, 0], sizes = [1, 1, 128], strides = [1, 1, 1]} : vector<3x3x128xf32> to vector<1x1x128xf32>
    %109 = vector.shape_cast %108 : vector<1x1x128xf32> to vector<128xf32>
    %110 = vector.shape_cast %109 : vector<128xf32> to vector<1x1x128xf32>
    %111 = vector.broadcast %110 : vector<1x1x128xf32> to vector<6x16x128xf32>
    %112 = arith.mulf %107, %111 : vector<6x16x128xf32>
    %113 = arith.addf %106, %112 : vector<6x16x128xf32>
    %c0_22 = arith.constant 0 : index
    %c0_23 = arith.constant 0 : index
    %114 = vector.load %arg6[%c0_22, %c0_23] : memref<1x128xf32, #tpu.memory_space<vmem>>, vector<1x128xf32>
    %115 = vector.shape_cast %114 : vector<1x128xf32> to vector<1x1x128xf32>
    %116 = vector.broadcast %115 : vector<1x1x128xf32> to vector<6x16x128xf32>
    %117 = arith.addf %113, %116 : vector<6x16x128xf32>
    %cst_24 = arith.constant 0.000000e+00 : f32
    %cst_25 = arith.constant 6.000000e+00 : f32
    %118 = vector.broadcast %cst_24 : f32 to vector<6x16x128xf32>
    %119 = arith.maximumf %118, %117 : vector<6x16x128xf32>
    %120 = vector.broadcast %cst_25 : f32 to vector<6x16x128xf32>
    %121 = arith.minimumf %120, %119 : vector<6x16x128xf32>
    %122 = vector.shape_cast %121 : vector<6x16x128xf32> to vector<96x128xf32>
    %c0_26 = arith.constant 0 : index
    %c0_27 = arith.constant 0 : index
    %123 = vector.load %arg7[%c0_26, %c0_27] : memref<128x128xf32, #tpu.memory_space<vmem>>, vector<128x128xf32>
    %cst_28 = arith.constant dense<0.000000e+00> : vector<96x128xf32>
    %124 = tpu.matmul %122, %123, %cst_28 {dimension_numbers = #tpu.dot_dimension_numbers<[1], [0], [0], [1], [0, 0, 1, 1], [], []>} : vector<96x128xf32>, vector<128x128xf32>, vector<96x128xf32> -> vector<96x128xf32>
    %c0_29 = arith.constant 0 : index
    %c0_30 = arith.constant 0 : index
    %125 = vector.load %arg8[%c0_29, %c0_30] : memref<1x128xf32, #tpu.memory_space<vmem>>, vector<1x128xf32>
    %126 = vector.broadcast %125 : vector<1x128xf32> to vector<96x128xf32>
    %127 = arith.addf %124, %126 : vector<96x128xf32>
    %128 = vector.shape_cast %127 : vector<96x128xf32> to vector<6x16x128xf32>
    %c1_i32_31 = arith.constant 1 : i32
    %129 = arith.addi %1, %c1_i32_31 : i32
    %c0_32 = arith.constant 0 : index
    %c0_33 = arith.constant 0 : index
    %c0_34 = arith.constant 0 : index
    %130 = arith.index_cast %129 : i32 to index
    %c1 = arith.constant 1 : index
    %c0_35 = arith.constant 0 : index
    %131 = vector.load %arg2[%c0_32, %c0_33, %c0_34, %130, %c1, %c0_35] : memref<1x1x1x18x24x128xf32, #tpu.memory_space<vmem>>, vector<1x1x1x6x16x128xf32>
    %132 = vector.shape_cast %131 : vector<1x1x1x6x16x128xf32> to vector<6x16x128xf32>
    %133 = arith.addf %128, %132 : vector<6x16x128xf32>
    %c0_36 = arith.constant 0 : index
    %134 = arith.index_cast %1 : i32 to index
    %c0_37 = arith.constant 0 : index
    %c0_38 = arith.constant 0 : index
    %135 = vector.load %arg11[%c0_36, %134, %c0_37, %c0_38] : memref<1x16x16x128xf32, #tpu.memory_space<vmem>>, vector<1x6x16x128xf32>
    %136 = vector.shape_cast %135 : vector<1x6x16x128xf32> to vector<6x16x128xf32>
    %137 = vector.shape_cast %133 : vector<6x16x128xf32> to vector<1x6x16x128xf32>
    tpu.vector_store %arg11[%c0_36, %134, %c0_37, %c0_38], %137 {strides = array<i32>} : memref<1x16x16x128xf32, #tpu.memory_space<vmem>>, vector<1x6x16x128xf32>,
    %138 = tpu.iota {dimensions = array<i32: 0>} : vector<6x1x1xi32>
    %139 = vector.broadcast %1 : i32 to vector<6x1x1xi32>
    %140 = arith.addi %139, %138 : vector<6x1x1xi32>
    %c6_i32_39 = arith.constant 6 : i32
    %141 = arith.muli %arg1, %c6_i32_39 : i32
    %142 = vector.broadcast %141 : i32 to vector<6x1x1xi32>
    %143 = arith.cmpi sge, %140, %142 : vector<6x1x1xi32>
    %144 = tpu.iota {dimensions = array<i32: 1>} : vector<1x16x1xi32>
    %c16_i32_40 = arith.constant 16 : i32
    %145 = vector.broadcast %c16_i32_40 : i32 to vector<1x16x1xi32>
    %146 = arith.cmpi slt, %144, %145 : vector<1x16x1xi32>
    %147 = vector.broadcast %143 : vector<6x1x1xi1> to vector<6x16x1xi1>
    %148 = vector.broadcast %146 : vector<1x16x1xi1> to vector<6x16x1xi1>
    %149 = arith.andi %147, %148 : vector<6x16x1xi1>
    %cst_41 = arith.constant 0.000000e+00 : f32
    %150 = vector.shape_cast %149 : vector<6x16x1xi1> to vector<6x16x1xi1>
    %151 = vector.broadcast %150 : vector<6x16x1xi1> to vector<6x16x128xi1>
    %152 = vector.broadcast %cst_41 : f32 to vector<6x16x128xf32>
    %153 = arith.select %151, %133, %152 : vector<6x16x128xi1>, vector<6x16x128xf32>
    %154 = vector.shape_cast %153 : vector<6x16x128xf32> to vector<96x128xf32>
    %c0_42 = arith.constant 0 : index
    %c0_43 = arith.constant 0 : index
    %155 = vector.load %arg12[%c0_42, %c0_43] : memref<1x128xf32, #tpu.memory_space<vmem>>, vector<1x128xf32>
    %cst_44 = arith.constant dense<0.000000e+00> : vector<128xf32>
    %156 = vector.multi_reduction <add>, %154, %cst_44 [0] : vector<96x128xf32> to vector<128xf32>
    %157 = vector.shape_cast %156 : vector<128xf32> to vector<1x128xf32>
    %158 = arith.addf %155, %157 : vector<1x128xf32>
    %c0_45 = arith.constant 0 : index
    %c0_46 = arith.constant 0 : index
    %159 = vector.load %arg12[%c0_45, %c0_46] : memref<1x128xf32, #tpu.memory_space<vmem>>, vector<1x128xf32>
    tpu.vector_store %arg12[%c0_45, %c0_46], %158 {strides = array<i32>} : memref<1x128xf32, #tpu.memory_space<vmem>>, vector<1x128xf32>,
    %c0_47 = arith.constant 0 : index
    %c0_48 = arith.constant 0 : index
    %160 = vector.load %arg13[%c0_47, %c0_48] : memref<1x128xf32, #tpu.memory_space<vmem>>, vector<1x128xf32>
    %161 = arith.mulf %154, %154 : vector<96x128xf32>
    %cst_49 = arith.constant dense<0.000000e+00> : vector<128xf32>
    %162 = vector.multi_reduction <add>, %161, %cst_49 [0] : vector<96x128xf32> to vector<128xf32>
    %163 = vector.shape_cast %162 : vector<128xf32> to vector<1x128xf32>
    %164 = arith.addf %160, %163 : vector<1x128xf32>
    %c0_50 = arith.constant 0 : index
    %c0_51 = arith.constant 0 : index
    %165 = vector.load %arg13[%c0_50, %c0_51] : memref<1x128xf32, #tpu.memory_space<vmem>>, vector<1x128xf32>
    tpu.vector_store %arg13[%c0_50, %c0_51], %164 {strides = array<i32>} : memref<1x128xf32, #tpu.memory_space<vmem>>, vector<1x128xf32>,
    %c2_i32 = arith.constant 2 : i32
    %166 = arith.cmpi eq, %arg1, %c2_i32 : i32
    %167 = arith.extui %166 : i1 to i32
    %c0_i32_52 = arith.constant 0 : i32
    %168 = arith.cmpi ne, %167, %c0_i32_52 : i32
    scf.if %168 {
      %c0_53 = arith.constant 0 : index
      %c0_54 = arith.constant 0 : index
      %169 = vector.load %arg12[%c0_53, %c0_54] : memref<1x128xf32, #tpu.memory_space<vmem>>, vector<1x128xf32>
      %cst_55 = arith.constant 2.560000e+02 : f32
      %170 = vector.broadcast %cst_55 : f32 to vector<1x128xf32>
      %171 = arith.divf %169, %170 : vector<1x128xf32>
      %c0_56 = arith.constant 0 : index
      %c0_57 = arith.constant 0 : index
      %172 = vector.load %arg13[%c0_56, %c0_57] : memref<1x128xf32, #tpu.memory_space<vmem>>, vector<1x128xf32>
      %cst_58 = arith.constant 2.560000e+02 : f32
      %173 = vector.broadcast %cst_58 : f32 to vector<1x128xf32>
      %174 = arith.divf %172, %173 : vector<1x128xf32>
      %175 = arith.mulf %171, %171 : vector<1x128xf32>
      %176 = arith.subf %174, %175 : vector<1x128xf32>
      %cst_59 = arith.constant 0.000000e+00 : f32
      %177 = vector.broadcast %cst_59 : f32 to vector<1x128xf32>
      %178 = arith.maximumf %176, %177 : vector<1x128xf32>
      %cst_60 = arith.constant 9.99999974E-6 : f32
      %179 = vector.broadcast %cst_60 : f32 to vector<1x128xf32>
      %180 = arith.addf %178, %179 : vector<1x128xf32>
      %181 = math.rsqrt %180 : vector<1x128xf32>
      %c0_61 = arith.constant 0 : index
      %c0_62 = arith.constant 0 : index
      %182 = vector.load %arg9[%c0_61, %c0_62] : memref<1x128xf32, #tpu.memory_space<vmem>>, vector<1x128xf32>
      %183 = arith.mulf %181, %182 : vector<1x128xf32>
      %c0_63 = arith.constant 0 : index
      %c0_64 = arith.constant 0 : index
      %184 = vector.load %arg10[%c0_63, %c0_64] : memref<1x128xf32, #tpu.memory_space<vmem>>, vector<1x128xf32>
      %185 = arith.mulf %171, %183 : vector<1x128xf32>
      %186 = arith.subf %184, %185 : vector<1x128xf32>
      %c0_i32_65 = arith.constant 0 : i32
      %c16_i32_66 = arith.constant 16 : i32
      %187 = arith.addi %c0_i32_65, %c16_i32_66 : i32
      %c1_i32_67 = arith.constant 1 : i32
      scf.for %arg14 = %c0_i32_65 to %187 step %c1_i32_67  : i32 {
        %c0_69 = arith.constant 0 : index
        %188 = arith.index_cast %arg14 : i32 to index
        %c0_70 = arith.constant 0 : index
        %c0_71 = arith.constant 0 : index
        %189 = vector.load %arg11[%c0_69, %188, %c0_70, %c0_71] : memref<1x16x16x128xf32, #tpu.memory_space<vmem>>, vector<1x1x16x128xf32>
        %190 = vector.shape_cast %189 : vector<1x1x16x128xf32> to vector<1x16x128xf32>
        %191 = vector.shape_cast %183 : vector<1x128xf32> to vector<1x1x128xf32>
        %192 = vector.broadcast %191 : vector<1x1x128xf32> to vector<1x16x128xf32>
        %193 = arith.mulf %190, %192 : vector<1x16x128xf32>
        %194 = vector.shape_cast %186 : vector<1x128xf32> to vector<1x1x128xf32>
        %195 = vector.broadcast %194 : vector<1x1x128xf32> to vector<1x16x128xf32>
        %196 = arith.addf %193, %195 : vector<1x16x128xf32>
        %c0_72 = arith.constant 0 : index
        %197 = arith.index_cast %arg14 : i32 to index
        %c0_73 = arith.constant 0 : index
        %c0_74 = arith.constant 0 : index
        %198 = vector.load %arg11[%c0_72, %197, %c0_73, %c0_74] : memref<1x16x16x128xf32, #tpu.memory_space<vmem>>, vector<1x1x16x128xf32>
        %199 = vector.shape_cast %198 : vector<1x1x16x128xf32> to vector<1x16x128xf32>
        %200 = vector.shape_cast %196 : vector<1x16x128xf32> to vector<1x1x16x128xf32>
        tpu.vector_store %arg11[%c0_72, %197, %c0_73, %c0_74], %200 {strides = array<i32>} : memref<1x16x16x128xf32, #tpu.memory_space<vmem>>, vector<1x1x16x128xf32>,
      }
      %c16_i32_68 = arith.constant 16 : i32
    } else {
    }
    return
  }
  func.func @transform_0(%arg0: i32, %arg1: i32) -> (i32, i32, i32, i32, i32, i32) {
    %c0_i32 = arith.constant 0 : i32
    %c0_i32_0 = arith.constant 0 : i32
    %c0_i32_1 = arith.constant 0 : i32
    %c0_i32_2 = arith.constant 0 : i32
    %c0_i32_3 = arith.constant 0 : i32
    %c0_i32_4 = arith.constant 0 : i32
    return %arg0, %c0_i32, %c0_i32_0, %c0_i32_1, %c0_i32_2, %c0_i32_3 : i32, i32, i32, i32, i32, i32
  }
  func.func @transform_1(%arg0: i32, %arg1: i32) -> (i32, i32) {
    %c0_i32 = arith.constant 0 : i32
    %c0_i32_0 = arith.constant 0 : i32
    %c0_i32_1 = arith.constant 0 : i32
    return %c0_i32, %c0_i32_0 : i32, i32
  }
  func.func @transform_2(%arg0: i32, %arg1: i32) -> (i32, i32) {
    %c0_i32 = arith.constant 0 : i32
    %c0_i32_0 = arith.constant 0 : i32
    %c0_i32_1 = arith.constant 0 : i32
    return %c0_i32, %c0_i32_0 : i32, i32
  }
  func.func @transform_3(%arg0: i32, %arg1: i32) -> (i32, i32, i32) {
    %c0_i32 = arith.constant 0 : i32
    %c0_i32_0 = arith.constant 0 : i32
    %c0_i32_1 = arith.constant 0 : i32
    %c0_i32_2 = arith.constant 0 : i32
    return %c0_i32, %c0_i32_0, %c0_i32_1 : i32, i32, i32
  }
  func.func @transform_4(%arg0: i32, %arg1: i32) -> (i32, i32) {
    %c0_i32 = arith.constant 0 : i32
    %c0_i32_0 = arith.constant 0 : i32
    %c0_i32_1 = arith.constant 0 : i32
    return %c0_i32, %c0_i32_0 : i32, i32
  }
  func.func @transform_5(%arg0: i32, %arg1: i32) -> (i32, i32) {
    %c0_i32 = arith.constant 0 : i32
    %c0_i32_0 = arith.constant 0 : i32
    %c0_i32_1 = arith.constant 0 : i32
    return %c0_i32, %c0_i32_0 : i32, i32
  }
  func.func @transform_6(%arg0: i32, %arg1: i32) -> (i32, i32) {
    %c0_i32 = arith.constant 0 : i32
    %c0_i32_0 = arith.constant 0 : i32
    %c0_i32_1 = arith.constant 0 : i32
    return %c0_i32, %c0_i32_0 : i32, i32
  }
  func.func @transform_7(%arg0: i32, %arg1: i32) -> (i32, i32) {
    %c0_i32 = arith.constant 0 : i32
    %c0_i32_0 = arith.constant 0 : i32
    %c0_i32_1 = arith.constant 0 : i32
    return %c0_i32, %c0_i32_0 : i32, i32
  }
  func.func @transform_8(%arg0: i32, %arg1: i32) -> (i32, i32) {
    %c0_i32 = arith.constant 0 : i32
    %c0_i32_0 = arith.constant 0 : i32
    %c0_i32_1 = arith.constant 0 : i32
    return %c0_i32, %c0_i32_0 : i32, i32
  }
  func.func @transform_9(%arg0: i32, %arg1: i32) -> (i32, i32, i32, i32) {
    %c0_i32 = arith.constant 0 : i32
    %c0_i32_0 = arith.constant 0 : i32
    %c0_i32_1 = arith.constant 0 : i32
    %c0_i32_2 = arith.constant 0 : i32
    return %arg0, %c0_i32, %c0_i32_0, %c0_i32_1 : i32, i32, i32, i32
  }
}

</mosaic_0001>

<llo_original>
// kernel: tpu_custom_call.1
$region0: #{tpu_custom_call.1}
  #allocation0 [shape = 'u32[]', space=smem, size = 0x4, offset = 0x4, fixed_abs, tag = 'smem constant byte address 0x4 - core index']
  #allocation1 [shape = 'u32[144,128]{1,0:T(1,128)}', space=vmem, size = 0x12000, scoped, tag = 'internal scratch']
  #allocation2 [shape = 'f32[1,128]{1,0:T(1,128)}', space=vmem, size = 0x200, scoped, tag = 'scratch operand']
  #allocation3 [shape = 'f32[1,128]{1,0:T(1,128)}', space=vmem, size = 0x200, scoped, tag = 'scratch operand']
  %s0 = inlined_call_operand.hbm [shape: f32[2,1,1,18,24,128], index: 0, kind: input, shape index: {}]
  %s1 = inlined_call_operand.hbm [shape: f32[128,128], index: 1, kind: input, shape index: {}]
  %s2 = inlined_call_operand.vmem [shape: f32[1,128], index: 2, kind: input, shape index: {}]
  %s3 = inlined_call_operand.hbm [shape: f32[3,3,128], index: 3, kind: input, shape index: {}]
  %s4 = inlined_call_operand.vmem [shape: f32[1,128], index: 4, kind: input, shape index: {}]
  %s5 = inlined_call_operand.hbm [shape: f32[128,128], index: 5, kind: input, shape index: {}]
  %s6 = inlined_call_operand.vmem [shape: f32[1,128], index: 6, kind: input, shape index: {}]
  %s7 = inlined_call_operand.vmem [shape: f32[1,128], index: 7, kind: input, shape index: {}]
  %s8 = inlined_call_operand.vmem [shape: f32[1,128], index: 8, kind: input, shape index: {}]
  %s9 = inlined_call_operand.hbm [shape: f32[2,16,16,128], index: 9, kind: output, shape index: {}]
  %s10 = sld [smem:[#allocation0]]
  $region100: #{tpu_custom_call.1} parent=0
    _
  %s12 = ssub.s32 1, %s10
  %s13 = scalar_select 0, %s12, %s10
  $region1: #{tpu_custom_call.1} parent=0
    #allocation4 [shape = 'u8[442368]{0}', space=vmem, size = 0x6c000, scoped, tag = 'input window, operand 0']
    #allocation5 [shape = 's32[2]{0}', space=sflag, size = 0x8, scoped, tag = 'scoped memory for tpu_custom_call.1']
    #allocation6 [shape = 's32[2]{0}', space=sflag, size = 0x8, scoped, tag = 'scoped memory for tpu_custom_call.1']
    #allocation7 [shape = 'u8[65536]{0}', space=vmem, size = 0x10000, scoped, tag = 'input window, operand 1, single buffered']
    #allocation8 [shape = 's32[1]{0}', space=sflag, size = 0x4, scoped, tag = 'scoped memory for tpu_custom_call.1']
    #allocation9 [shape = 'u8[6144]{0}', space=vmem, size = 0x1800, scoped, tag = 'input window, operand 3, single buffered']
    #allocation10 [shape = 'u8[65536]{0}', space=vmem, size = 0x10000, scoped, tag = 'input window, operand 5, single buffered']
    #allocation11 [shape = 's32[1]{0}', space=sflag, size = 0x4, scoped, tag = 'scoped memory for tpu_custom_call.1']
    #allocation12 [shape = 'u8[262144]{0}', space=vmem, size = 0x40000, scoped, tag = 'output window, operand 0']
    %14 = vsyncpa [#allocation5], 0
    %s15 = scalar_lea.sflag [#allocation5], 1
    %16 = vsyncpa %s15, 0
    %17 = vsyncpa [#allocation8], 0
    %18 = vsyncpa [#allocation11], 0
    %19 = vsyncpa [#allocation6], 0
    %s20 = scalar_lea.sflag [#allocation6], 1
    %21 = vsyncpa %s20, 0
    loop: start=0, step=1, limit=8
    $region2: #{tpu_custom_call.1} parent=1 // loop_pre_header
      _
    $region3: #{tpu_custom_call.1} parent=1 // loop_header
      %s23 = sphi 0, %s27
      %p24 = scmp.ge.s32.totalorder %s23, 8
      %s30 = sphi 0, %s42
      %s31 = sphi 0, %s38
      %s32 = sphi 0, %s30
      %s33 = sphi 0, %s31
      %s34 = sphi 0, %s32
      %s35 = sphi 0, %s33
      %s45 = sphi 0, %s47
      %s48 = sphi 0, %s45
      %s49 = sphi 0, %s48
      %s65 = sphi 0, %s49
      %s69 = sphi 0, %s69
      %s71 = sphi 0, %s69
      %s72 = sphi 0, %s71
      %s86 = sphi 0, %s72
      %s90 = sphi 0, %s90
      %s92 = sphi 0, %s90
      %s93 = sphi 0, %s92
      %s107 = sphi 0, %s93
      %s111 = sphi 0, %s111
      %s113 = sphi 0, %s111
      %s114 = sphi 0, %s113
      %s128 = sphi 0, %s114
      %s132 = sphi 0, %s132
      %s134 = sphi 0, %s132
      %s135 = sphi 0, %s134
      %s149 = sphi 0, %s135
      %s153 = sphi 0, %s153
      %s155 = sphi 0, %s153
      %s156 = sphi 0, %s155
      %s170 = sphi 0, %s156
      %s174 = sphi 0, %s174
      %s176 = sphi 0, %s174
      %s177 = sphi 0, %s176
      %s191 = sphi 0, %s177
      %s195 = sphi 0, %s195
      %s197 = sphi 0, %s195
      %s198 = sphi 0, %s197
      %s212 = sphi 0, %s198
      %s216 = sphi 0, %s216
      %s218 = sphi 0, %s216
      %s219 = sphi 0, %s218
      %s233 = sphi 0, %s219
      %s239 = sphi 0, %s241
      %s242 = sphi 0, %s239
      %s243 = sphi 0, %s242
      %s259 = sphi 0, %s243
    $region4: #{tpu_custom_call.1} parent=1 // loop_header_branch
      %26 = sbr.rel (%p24) target = $region8
    $region5: #{tpu_custom_call.1} parent=1 // loop_body
      %s28 = ssub.s32 %s23, 1
      %s29 = ssub.s32 %s23, 2
      %s36 = sadd.s32 1, %s31
      %p37 = scmp.ge.s32.totalorder %s36, 3
      %s38 = scalar_select %p37, 0, %s36
      %s39 = sadd.s32 1, %s30
      %s40 = scalar_select %p37, %s39, %s30
      %p41 = scmp.ge.s32.totalorder %s40, 2
      %s42 = scalar_select %p41, 0, %s40
      %s43 = ssub.s32 %s30, %s42
      %p44 = scmp.eq.s32.totalorder %s43, 0
      %s46 = sadd.s32 %s45, 1
      %s47 = scalar_select %p44, %s45, %s46
      %p50 = pneg %p44
      %p51 = scmp.eq.s32.totalorder %s23, 5
      %p52 = por %p50, %p51
      %p53 = scmp.ne.s32.totalorder %s45, %s48
      %p54 = scmp.eq.s32.totalorder %s23, 0
      %p55 = por %p53, %p54
      %p56 = scmp.ne.s32.totalorder %s45, %s48
      %p57 = scmp.eq.s32.totalorder %s28, 5
      %p58 = por %p56, %p57
      %p59 = scmp.ne.s32.totalorder %s48, %s49
      %p60 = scmp.eq.s32.totalorder %s28, 0
      %p61 = por %p59, %p60
      %p62 = scmp.ne.s32.totalorder %s48, %s49
      %p63 = scmp.eq.s32.totalorder %s29, 5
      %p64 = por %p62, %p63
      %p66 = scmp.ne.s32.totalorder %s49, %s65
      %p67 = scmp.eq.s32.totalorder %s29, 0
      %p68 = por %p66, %p67
      %s70 = sadd.s32 %s69, 1
      %p73 = scmp.eq.s32.totalorder %s23, 5
      %p74 = scmp.ne.s32.totalorder %s69, %s71
      %p75 = scmp.eq.s32.totalorder %s23, 0
      %p76 = por %p74, %p75
      %p77 = scmp.ne.s32.totalorder %s69, %s71
      %p78 = scmp.eq.s32.totalorder %s28, 5
      %p79 = por %p77, %p78
      %p80 = scmp.ne.s32.totalorder %s71, %s72
      %p81 = scmp.eq.s32.totalorder %s28, 0
      %p82 = por %p80, %p81
      %p83 = scmp.ne.s32.totalorder %s71, %s72
      %p84 = scmp.eq.s32.totalorder %s29, 5
      %p85 = por %p83, %p84
      %p87 = scmp.ne.s32.totalorder %s72, %s86
      %p88 = scmp.eq.s32.totalorder %s29, 0
      %p89 = por %p87, %p88
      %s91 = sadd.s32 %s90, 1
      %p94 = scmp.eq.s32.totalorder %s23, 5
      %p95 = scmp.ne.s32.totalorder %s90, %s92
      %p96 = scmp.eq.s32.totalorder %s23, 0
      %p97 = por %p95, %p96
      %p98 = scmp.ne.s32.totalorder %s90, %s92
      %p99 = scmp.eq.s32.totalorder %s28, 5
      %p100 = por %p98, %p99
      %p101 = scmp.ne.s32.totalorder %s92, %s93
      %p102 = scmp.eq.s32.totalorder %s28, 0
      %p103 = por %p101, %p102
      %p104 = scmp.ne.s32.totalorder %s92, %s93
      %p105 = scmp.eq.s32.totalorder %s29, 5
      %p106 = por %p104, %p105
      %p108 = scmp.ne.s32.totalorder %s93, %s107
      %p109 = scmp.eq.s32.totalorder %s29, 0
      %p110 = por %p108, %p109
      %s112 = sadd.s32 %s111, 1
      %p115 = scmp.eq.s32.totalorder %s23, 5
      %p116 = scmp.ne.s32.totalorder %s111, %s113
      %p117 = scmp.eq.s32.totalorder %s23, 0
      %p118 = por %p116, %p117
      %p119 = scmp.ne.s32.totalorder %s111, %s113
      %p120 = scmp.eq.s32.totalorder %s28, 5
      %p121 = por %p119, %p120
      %p122 = scmp.ne.s32.totalorder %s113, %s114
      %p123 = scmp.eq.s32.totalorder %s28, 0
      %p124 = por %p122, %p123
      %p125 = scmp.ne.s32.totalorder %s113, %s114
      %p126 = scmp.eq.s32.totalorder %s29, 5
      %p127 = por %p125, %p126
      %p129 = scmp.ne.s32.totalorder %s114, %s128
      %p130 = scmp.eq.s32.totalorder %s29, 0
      %p131 = por %p129, %p130
      %s133 = sadd.s32 %s132, 1
      %p136 = scmp.eq.s32.totalorder %s23, 5
      %p137 = scmp.ne.s32.totalorder %s132, %s134
      %p138 = scmp.eq.s32.totalorder %s23, 0
      %p139 = por %p137, %p138
      %p140 = scmp.ne.s32.totalorder %s132, %s134
      %p141 = scmp.eq.s32.totalorder %s28, 5
      %p142 = por %p140, %p141
      %p143 = scmp.ne.s32.totalorder %s134, %s135
      %p144 = scmp.eq.s32.totalorder %s28, 0
      %p145 = por %p143, %p144
      %p146 = scmp.ne.s32.totalorder %s134, %s135
      %p147 = scmp.eq.s32.totalorder %s29, 5
      %p148 = por %p146, %p147
      %p150 = scmp.ne.s32.totalorder %s135, %s149
      %p151 = scmp.eq.s32.totalorder %s29, 0
      %p152 = por %p150, %p151
      %s154 = sadd.s32 %s153, 1
      %p157 = scmp.eq.s32.totalorder %s23, 5
      %p158 = scmp.ne.s32.totalorder %s153, %s155
      %p159 = scmp.eq.s32.totalorder %s23, 0
      %p160 = por %p158, %p159
      %p161 = scmp.ne.s32.totalorder %s153, %s155
      %p162 = scmp.eq.s32.totalorder %s28, 5
      %p163 = por %p161, %p162
      %p164 = scmp.ne.s32.totalorder %s155, %s156
      %p165 = scmp.eq.s32.totalorder %s28, 0
      %p166 = por %p164, %p165
      %p167 = scmp.ne.s32.totalorder %s155, %s156
      %p168 = scmp.eq.s32.totalorder %s29, 5
      %p169 = por %p167, %p168
      %p171 = scmp.ne.s32.totalorder %s156, %s170
      %p172 = scmp.eq.s32.totalorder %s29, 0
      %p173 = por %p171, %p172
      %s175 = sadd.s32 %s174, 1
      %p178 = scmp.eq.s32.totalorder %s23, 5
      %p179 = scmp.ne.s32.totalorder %s174, %s176
      %p180 = scmp.eq.s32.totalorder %s23, 0
      %p181 = por %p179, %p180
      %p182 = scmp.ne.s32.totalorder %s174, %s176
      %p183 = scmp.eq.s32.totalorder %s28, 5
      %p184 = por %p182, %p183
      %p185 = scmp.ne.s32.totalorder %s176, %s177
      %p186 = scmp.eq.s32.totalorder %s28, 0
      %p187 = por %p185, %p186
      %p188 = scmp.ne.s32.totalorder %s176, %s177
      %p189 = scmp.eq.s32.totalorder %s29, 5
      %p190 = por %p188, %p189
      %p192 = scmp.ne.s32.totalorder %s177, %s191
      %p193 = scmp.eq.s32.totalorder %s29, 0
      %p194 = por %p192, %p193
      %s196 = sadd.s32 %s195, 1
      %p199 = scmp.eq.s32.totalorder %s23, 5
      %p200 = scmp.ne.s32.totalorder %s195, %s197
      %p201 = scmp.eq.s32.totalorder %s23, 0
      %p202 = por %p200, %p201
      %p203 = scmp.ne.s32.totalorder %s195, %s197
      %p204 = scmp.eq.s32.totalorder %s28, 5
      %p205 = por %p203, %p204
      %p206 = scmp.ne.s32.totalorder %s197, %s198
      %p207 = scmp.eq.s32.totalorder %s28, 0
      %p208 = por %p206, %p207
      %p209 = scmp.ne.s32.totalorder %s197, %s198
      %p210 = scmp.eq.s32.totalorder %s29, 5
      %p211 = por %p209, %p210
      %p213 = scmp.ne.s32.totalorder %s198, %s212
      %p214 = scmp.eq.s32.totalorder %s29, 0
      %p215 = por %p213, %p214
      %s217 = sadd.s32 %s216, 1
      %p220 = scmp.eq.s32.totalorder %s23, 5
      %p221 = scmp.ne.s32.totalorder %s216, %s218
      %p222 = scmp.eq.s32.totalorder %s23, 0
      %p223 = por %p221, %p222
      %p224 = scmp.ne.s32.totalorder %s216, %s218
      %p225 = scmp.eq.s32.totalorder %s28, 5
      %p226 = por %p224, %p225
      %p227 = scmp.ne.s32.totalorder %s218, %s219
      %p228 = scmp.eq.s32.totalorder %s28, 0
      %p229 = por %p227, %p228
      %p230 = scmp.ne.s32.totalorder %s218, %s219
      %p231 = scmp.eq.s32.totalorder %s29, 5
      %p232 = por %p230, %p231
      %p234 = scmp.ne.s32.totalorder %s219, %s233
      %p235 = scmp.eq.s32.totalorder %s29, 0
      %p236 = por %p234, %p235
      %s237 = ssub.s32 %s30, %s42
      %p238 = scmp.eq.s32.totalorder %s237, 0
      %s240 = sadd.s32 %s239, 1
      %s241 = scalar_select %p238, %s239, %s240
      %p244 = pneg %p238
      %p245 = scmp.eq.s32.totalorder %s23, 5
      %p246 = por %p244, %p245
      %p247 = scmp.ne.s32.totalorder %s239, %s242
      %p248 = scmp.eq.s32.totalorder %s23, 0
      %p249 = por %p247, %p248
      %p250 = scmp.ne.s32.totalorder %s239, %s242
      %p251 = scmp.eq.s32.totalorder %s28, 5
      %p252 = por %p250, %p251
      %p253 = scmp.ne.s32.totalorder %s242, %s243
      %p254 = scmp.eq.s32.totalorder %s28, 0
      %p255 = por %p253, %p254
      %p256 = scmp.ne.s32.totalorder %s242, %s243
      %p257 = scmp.eq.s32.totalorder %s29, 5
      %p258 = por %p256, %p257
      %p260 = scmp.ne.s32.totalorder %s243, %s259
      %p261 = scmp.eq.s32.totalorder %s29, 0
      %p262 = por %p260, %p261
      %p263 = scmp.le.s32.totalorder 1, %s23
      %p264 = scmp.lt.s32.totalorder %s23, 7
      %p265 = pnand %p263, %p264
      %p266 = pneg %p265
      // Predicated region
      $region9: #{tpu_custom_call.1} parent=5 // pred_check
        _
      $region10: #{tpu_custom_call.1} parent=5 // pred_check_branch
        %268 = sbr.rel (%p265) target = $region12
      $region11: #{tpu_custom_call.1} parent=5 // pred_region
        %s269 = ssub.s32 %s23, 1
        // Predicated region
        $region13: #{tpu_custom_call.1} parent=11 // pred_check
          %p270 = pneg %p82
        $region14: #{tpu_custom_call.1} parent=11 // pred_check_branch
          %272 = sbr.rel (%p270) target = $region16
        $region15: #{tpu_custom_call.1} parent=11 // pred_region
          %s274 = ssub.s32 2048, 2048
          %275 = vsyncadd [#allocation8], %s274
          %s276 = sshll.u32 [#allocation7], 4
          %s277 = int_to_ptr.vmem [resolvable:$true] %s276
          %282 = dma.hbm_to_vmem [thread:$0]  %s1, 2048, %s277, [#allocation8], 128, 128, 8
        $region16: #{tpu_custom_call.1} parent=11 // pred_fallthru
          _
        // Predicated region
        $region17: #{tpu_custom_call.1} parent=11 // pred_check
          %p283 = pneg %p103
        $region18: #{tpu_custom_call.1} parent=11 // pred_check_branch
          %285 = sbr.rel (%p283) target = $region20
        $region19: #{tpu_custom_call.1} parent=11 // pred_region
          _
        $region20: #{tpu_custom_call.1} parent=11 // pred_fallthru
          _
        // Predicated region
        $region21: #{tpu_custom_call.1} parent=11 // pred_check
          %p286 = pneg %p124
        $region22: #{tpu_custom_call.1} parent=11 // pred_check_branch
          %288 = sbr.rel (%p286) target = $region24
        $region23: #{tpu_custom_call.1} parent=11 // pred_region
          %s290 = ssub.s32 192, 192
          %291 = vsyncadd [#allocation8], %s290
          %s292 = sshll.u32 [#allocation9], 4
          %s293 = int_to_ptr.vmem [resolvable:$true] %s292
          %298 = dma.hbm_to_vmem [thread:$0]  %s3, 192, %s293, [#allocation8], 64, 64, 4
        $region24: #{tpu_custom_call.1} parent=11 // pred_fallthru
          _
        // Predicated region
        $region25: #{tpu_custom_call.1} parent=11 // pred_check
          %p299 = pneg %p145
        $region26: #{tpu_custom_call.1} parent=11 // pred_check_branch
          %301 = sbr.rel (%p299) target = $region28
        $region27: #{tpu_custom_call.1} parent=11 // pred_region
          _
        $region28: #{tpu_custom_call.1} parent=11 // pred_fallthru
          _
        // Predicated region
        $region29: #{tpu_custom_call.1} parent=11 // pred_check
          %p302 = pneg %p166
        $region30: #{tpu_custom_call.1} parent=11 // pred_check_branch
          %304 = sbr.rel (%p302) target = $region32
        $region31: #{tpu_custom_call.1} parent=11 // pred_region
          %s306 = ssub.s32 2048, 2048
          %307 = vsyncadd [#allocation11], %s306
          %s308 = sshll.u32 [#allocation10], 4
          %s309 = int_to_ptr.vmem [resolvable:$true] %s308
          %314 = dma.hbm_to_vmem [thread:$0]  %s5, 2048, %s309, [#allocation11], 128, 128, 8
        $region32: #{tpu_custom_call.1} parent=11 // pred_fallthru
          _
        // Predicated region
        $region33: #{tpu_custom_call.1} parent=11 // pred_check
          %p315 = pneg %p187
        $region34: #{tpu_custom_call.1} parent=11 // pred_check_branch
          %317 = sbr.rel (%p315) target = $region36
        $region35: #{tpu_custom_call.1} parent=11 // pred_region
          _
        $region36: #{tpu_custom_call.1} parent=11 // pred_fallthru
          _
        // Predicated region
        $region37: #{tpu_custom_call.1} parent=11 // pred_check
          %p318 = pneg %p208
        $region38: #{tpu_custom_call.1} parent=11 // pred_check_branch
          %320 = sbr.rel (%p318) target = $region40
        $region39: #{tpu_custom_call.1} parent=11 // pred_region
          _
        $region40: #{tpu_custom_call.1} parent=11 // pred_fallthru
          _
        // Predicated region
        $region41: #{tpu_custom_call.1} parent=11 // pred_check
          %p321 = pneg %p229
        $region42: #{tpu_custom_call.1} parent=11 // pred_check_branch
          %323 = sbr.rel (%p321) target = $region44
        $region43: #{tpu_custom_call.1} parent=11 // pred_region
          _
        $region44: #{tpu_custom_call.1} parent=11 // pred_fallthru
          _
      $region12: #{tpu_custom_call.1} parent=5 // pred_fallthru
        _
      %p324 = scmp.lt.s32.totalorder %s23, 6
      // Predicated region
      $region45: #{tpu_custom_call.1} parent=5 // pred_check
        %p325 = pneg %p324
      $region46: #{tpu_custom_call.1} parent=5 // pred_check_branch
        %327 = sbr.rel (%p325) target = $region48
      $region47: #{tpu_custom_call.1} parent=5 // pred_region
        // Predicated region
        $region49: #{tpu_custom_call.1} parent=47 // pred_check
          %p328 = pneg %p55
        $region50: #{tpu_custom_call.1} parent=47 // pred_check_branch
          %330 = sbr.rel (%p328) target = $region52
        $region51: #{tpu_custom_call.1} parent=47 // pred_region
          %s331 = sand.u32 %s45, 1
          %s332 = scalar_lea.sflag [#allocation5], %s331
          %s333 = sand.u32 %s45, 1
          %s334 = smul.addr %s333, 432
          %s335 = scalar_lea.vmem [#allocation4], %s334
          %s337 = ssub.s32 6912, 6912
          %338 = vsyncadd %s332, %s337
          %s339 = smul.addr %s30, 54
          %s340 = smul.addr %s339, 128
          %s341 = scalar_lea.hbm %s0, %s340
          %s342 = sshll.u32 %s335, 4
          %s343 = int_to_ptr.vmem [resolvable:$true] %s342
          %348 = dma.hbm_to_vmem [thread:$0]  %s341, 6912, %s343, %s332, 128, 128, 8
        $region52: #{tpu_custom_call.1} parent=47 // pred_fallthru
          _
      $region48: #{tpu_custom_call.1} parent=5 // pred_fallthru
        _
      %p349 = scmp.le.s32.totalorder 1, %s23
      %p350 = scmp.lt.s32.totalorder %s23, 7
      %p351 = pnand %p349, %p350
      %p352 = pneg %p351
      // Predicated region
      $region53: #{tpu_custom_call.1} parent=5 // pred_check
        _
      $region54: #{tpu_custom_call.1} parent=5 // pred_check_branch
        %354 = sbr.rel (%p351) target = $region56
      $region55: #{tpu_custom_call.1} parent=5 // pred_region
        %s355 = ssub.s32 %s23, 1
        %s356 = sand.u32 %s48, 1
        %s357 = scalar_lea.sflag [#allocation5], %s356
        %s358 = sand.u32 %s48, 1
        %s359 = smul.addr %s358, 432
        %s360 = scalar_lea.vmem [#allocation4], %s359
        // Predicated region
        $region57: #{tpu_custom_call.1} parent=55 // pred_check
          %p361 = pneg %p61
        $region58: #{tpu_custom_call.1} parent=55 // pred_check_branch
          %363 = sbr.rel (%p361) target = $region60
        $region59: #{tpu_custom_call.1} parent=55 // pred_region
          %364 = dma.done %s357, 6912
        $region60: #{tpu_custom_call.1} parent=55 // pred_fallthru
          _
        // Predicated region
        $region61: #{tpu_custom_call.1} parent=55 // pred_check
          %p365 = pneg %p82
        $region62: #{tpu_custom_call.1} parent=55 // pred_check_branch
          %367 = sbr.rel (%p365) target = $region64
        $region63: #{tpu_custom_call.1} parent=55 // pred_region
          %368 = dma.done [#allocation8], 2048
        $region64: #{tpu_custom_call.1} parent=55 // pred_fallthru
          _
        // Predicated region
        $region65: #{tpu_custom_call.1} parent=55 // pred_check
          %p369 = pneg %p124
        $region66: #{tpu_custom_call.1} parent=55 // pred_check_branch
          %371 = sbr.rel (%p369) target = $region68
        $region67: #{tpu_custom_call.1} parent=55 // pred_region
          %372 = dma.done [#allocation8], 192
        $region68: #{tpu_custom_call.1} parent=55 // pred_fallthru
          _
        // Predicated region
        $region69: #{tpu_custom_call.1} parent=55 // pred_check
          %p373 = pneg %p166
        $region70: #{tpu_custom_call.1} parent=55 // pred_check_branch
          %375 = sbr.rel (%p373) target = $region72
        $region71: #{tpu_custom_call.1} parent=55 // pred_region
          %376 = dma.done [#allocation11], 2048
        $region72: #{tpu_custom_call.1} parent=55 // pred_fallthru
          _
        %s377 = sand.u32 %s48, 1
        %s378 = scalar_lea.sflag [#allocation5], %s377
        %s379 = sand.u32 %s48, 1
        %s380 = smul.addr %s379, 432
        %s381 = scalar_lea.vmem [#allocation4], %s380
        %p382 = pneg %p61
        %p383 = pneg %p58
        %p384 = pneg %p82
        %p385 = pneg %p79
        %p386 = pneg %p103
        %p387 = pneg %p100
        %p388 = pneg %p124
        %p389 = pneg %p121
        %p390 = pneg %p145
        %p391 = pneg %p142
        %p392 = pneg %p166
        %p393 = pneg %p163
        %p394 = pneg %p187
        %p395 = pneg %p184
        %p396 = pneg %p208
        %p397 = pneg %p205
        %p398 = pneg %p229
        %p399 = pneg %p226
        %p400 = pneg %p255
        %p401 = pneg %p252
        %s402 = sand.u32 %s242, 1
        %s403 = scalar_lea.sflag [#allocation6], %s402
        %s404 = sand.u32 %s242, 1
        %s405 = smul.addr %s404, 256
        %s406 = scalar_lea.vmem [#allocation12], %s405
        %s407 = smul.u32 %s33, 6
        %p408 = scmp.lt.s32.totalorder %s407, 10
        %s409 = scalar_select %p408, %s407, 10
        %p410 = scmp.eq.s32.totalorder %s33, 0
        // Predicated region
        $region73: #{tpu_custom_call.1} parent=55 // pred_check
          %p411 = pneg %p410
        $region74: #{tpu_custom_call.1} parent=55 // pred_check_branch
          %413 = sbr.rel (%p411) target = $region76
        $region75: #{tpu_custom_call.1} parent=55 // pred_region
          %414 = vst [vmem:[#allocation2] sm:$0x1] 0.0
          %415 = vst [vmem:[#allocation3] sm:$0x1] 0.0
        $region76: #{tpu_custom_call.1} parent=55 // pred_fallthru
          _
        %v416 = vld [vmem:[#allocation7] sm:$0xff]
        %v417 = vld [vmem:[#allocation7 + $0x8] sm:$0xff]
        %v418 = vld [vmem:[#allocation7 + $0x10] sm:$0xff]
        %v419 = vld [vmem:[#allocation7 + $0x18] sm:$0xff]
        %v420 = vld [vmem:[#allocation7 + $0x20] sm:$0xff]
        %v421 = vld [vmem:[#allocation7 + $0x28] sm:$0xff]
        %v422 = vld [vmem:[#allocation7 + $0x30] sm:$0xff]
        %v423 = vld [vmem:[#allocation7 + $0x38] sm:$0xff]
        %v424 = vld [vmem:[#allocation7 + $0x40] sm:$0xff]
        %v425 = vld [vmem:[#allocation7 + $0x48] sm:$0xff]
        %v426 = vld [vmem:[#allocation7 + $0x50] sm:$0xff]
        %v427 = vld [vmem:[#allocation7 + $0x58] sm:$0xff]
        %v428 = vld [vmem:[#allocation7 + $0x60] sm:$0xff]
        %v429 = vld [vmem:[#allocation7 + $0x68] sm:$0xff]
        %v430 = vld [vmem:[#allocation7 + $0x70] sm:$0xff]
        %v431 = vld [vmem:[#allocation7 + $0x78] sm:$0xff]
        %v432 = vld [vmem:[%s2] sm:$0x1]
        %v433 = vld [vmem:[#allocation9] sm:$0x7]
        %v434 = vld [vmem:[#allocation9 + $0x4] sm:$0x7]
        %v435 = vld [vmem:[#allocation9 + $0x8] sm:$0x7]
        %s436 = smul.u32 %s409, 24
        %s437 = scalar_lea.vmem %s360, %s436 [#allocation4]
        %v438 = vld [vmem:[%s437] sm:$0xff]
        %v439 = vld [vmem:[%s437 + $0x8] sm:$0xff]
        %v440 = vld [vmem:[%s437 + $0x10] sm:$0xff]
        %v441 = vld [vmem:[%s437 + $0x18] sm:$0xff]
        %v442 = vld [vmem:[%s437 + $0x20] sm:$0xff]
        %v443 = vld [vmem:[%s437 + $0x28] sm:$0xff]
        %v444 = vld [vmem:[%s437 + $0x30] sm:$0xff]
        %v445 = vld [vmem:[%s437 + $0x38] sm:$0xff]
        %v446 = vld [vmem:[%s437 + $0x40] sm:$0xff]
        %v447 = vld [vmem:[%s437 + $0x48] sm:$0xff]
        %v448 = vld [vmem:[%s437 + $0x50] sm:$0xff]
        %v449 = vld [vmem:[%s437 + $0x58] sm:$0xff]
        %v450 = vld [vmem:[%s437 + $0x60] sm:$0xff]
        %v451 = vld [vmem:[%s437 + $0x68] sm:$0xff]
        %v452 = vld [vmem:[%s437 + $0x70] sm:$0xff]
        %v453 = vld [vmem:[%s437 + $0x78] sm:$0xff]
        %v454 = vld [vmem:[%s437 + $0x80] sm:$0xff]
        %v455 = vld [vmem:[%s437 + $0x88] sm:$0xff]
        %v456 = vld [vmem:[%s437 + $0x90] sm:$0xff]
        %v457 = vld [vmem:[%s437 + $0x98] sm:$0xff]
        %v458 = vld [vmem:[%s437 + $0xa0] sm:$0xff]
        %v459 = vld [vmem:[%s437 + $0xa8] sm:$0xff]
        %v460 = vld [vmem:[%s437 + $0xb0] sm:$0xff]
        %v461 = vld [vmem:[%s437 + $0xb8] sm:$0xff]
        %v463 = vlaneseq
        %v464 = vshrl.u32 %v463, 7
        %v465 = vsub.s32 0, %v464
        %v466 = vrot.slane %v432, %v465
        %468 = vmatprep.subr.mxu0 0.0
        %469 = vmatpush1.msra.mxu0 %v431
        %470 = vmatprep.subr.mxu0 0.0
        %471 = vmatpush1.msra.mxu0 %v430
        %472 = vmatprep.subr.mxu0 0.0
        %473 = vmatpush1.msra.mxu0 %v429
        %474 = vmatprep.subr.mxu0 0.0
        %475 = vmatpush1.msra.mxu0 %v428
        %476 = vmatprep.subr.mxu0 0.0
        %477 = vmatpush1.msra.mxu0 %v427
        %478 = vmatprep.subr.mxu0 0.0
        %479 = vmatpush1.msra.mxu0 %v426
        %480 = vmatprep.subr.mxu0 0.0
        %481 = vmatpush1.msra.mxu0 %v425
        %482 = vmatprep.subr.mxu0 0.0
        %483 = vmatpush1.msra.mxu0 %v424
        %484 = vmatprep.subr.mxu0 0.0
        %485 = vmatpush1.msra.mxu0 %v423
        %486 = vmatprep.subr.mxu0 0.0
        %487 = vmatpush1.msra.mxu0 %v422
        %488 = vmatprep.subr.mxu0 0.0
        %489 = vmatpush1.msra.mxu0 %v421
        %490 = vmatprep.subr.mxu0 0.0
        %491 = vmatpush1.msra.mxu0 %v420
        %492 = vmatprep.subr.mxu0 0.0
        %493 = vmatpush1.msra.mxu0 %v419
        %494 = vmatprep.subr.mxu0 0.0
        %495 = vmatpush1.msra.mxu0 %v418
        %496 = vmatprep.subr.mxu0 0.0
        %497 = vmatpush1.msra.mxu0 %v417
        %498 = vmatprep.subr.mxu0 0.0
        %499 = vmatpush1.msra.mxu0 %v416
        %500 = vmatprep.subr.mxu0 0.0
        %501 = vmatpush2.msra.mxu0 0.0
        %502 = vmatprep.subr.mxu0 0.0
        %503 = vmatpush2.msra.mxu0 0.0
        %504 = vmatprep.subr.mxu0 0.0
        %505 = vmatpush2.msra.mxu0 0.0
        %506 = vmatprep.subr.mxu0 0.0
        %507 = vmatpush2.msra.mxu0 0.0
        %508 = vmatprep.subr.mxu0 0.0
        %509 = vmatpush2.msra.mxu0 0.0
        %510 = vmatprep.subr.mxu0 0.0
        %511 = vmatpush2.msra.mxu0 0.0
        %512 = vmatprep.subr.mxu0 0.0
        %513 = vmatpush2.msra.mxu0 0.0
        %514 = vmatprep.subr.mxu0 0.0
        %515 = vmatpush2.msra.mxu0 0.0
        %516 = vmatprep.subr.mxu0 0.0
        %517 = vmatpush2.msra.mxu0 0.0
        %518 = vmatprep.subr.mxu0 0.0
        %519 = vmatpush2.msra.mxu0 0.0
        %520 = vmatprep.subr.mxu0 0.0
        %521 = vmatpush2.msra.mxu0 0.0
        %522 = vmatprep.subr.mxu0 0.0
        %523 = vmatpush2.msra.mxu0 0.0
        %524 = vmatprep.subr.mxu0 0.0
        %525 = vmatpush2.msra.mxu0 0.0
        %526 = vmatprep.subr.mxu0 0.0
        %527 = vmatpush2.msra.mxu0 0.0
        %528 = vmatprep.subr.mxu0 0.0
        %529 = vmatpush2.msra.mxu0 0.0
        %530 = vmatprep.subr.mxu0 0.0
        %531 = vmatpush2.msra.mxu0 0.0
        %532 = vmatprep.mubr.f32.mxu0 0.0
        %533 = vmatmul.mubr.f32.gmra.mxu0 %v438
        %v534 = vpop.f32.mrf.mxu0
        %v535 = vadd.f32 %v466, %v534
        %v536 = vpop.f32.mrf.mxu0
        %537 = vmatprep.mubr.f32.mxu0 0.0
        %538 = vmatmul.mubr.f32.gmra.mxu0 %v439
        %v539 = vpop.f32.mrf.mxu0
        %v540 = vadd.f32 %v466, %v539
        %v541 = vpop.f32.mrf.mxu0
        %542 = vmatprep.mubr.f32.mxu0 0.0
        %543 = vmatmul.mubr.f32.gmra.mxu0 %v440
        %v544 = vpop.f32.mrf.mxu0
        %v545 = vadd.f32 %v466, %v544
        %v546 = vpop.f32.mrf.mxu0
        %547 = vmatprep.mubr.f32.mxu0 0.0
        %548 = vmatmul.mubr.f32.gmra.mxu0 %v441
        %v549 = vpop.f32.mrf.mxu0
        %v550 = vadd.f32 %v466, %v549
        %v551 = vpop.f32.mrf.mxu0
        %552 = vmatprep.mubr.f32.mxu0 0.0
        %553 = vmatmul.mubr.f32.gmra.mxu0 %v442
        %v554 = vpop.f32.mrf.mxu0
        %v555 = vadd.f32 %v466, %v554
        %v556 = vpop.f32.mrf.mxu0
        %557 = vmatprep.mubr.f32.mxu0 0.0
        %558 = vmatmul.mubr.f32.gmra.mxu0 %v443
        %v559 = vpop.f32.mrf.mxu0
        %v560 = vadd.f32 %v466, %v559
        %v561 = vpop.f32.mrf.mxu0
        %562 = vmatprep.mubr.f32.mxu0 0.0
        %563 = vmatmul.mubr.f32.gmra.mxu0 %v444
        %v564 = vpop.f32.mrf.mxu0
        %v565 = vadd.f32 %v466, %v564
        %v566 = vpop.f32.mrf.mxu0
        %567 = vmatprep.mubr.f32.mxu0 0.0
        %568 = vmatmul.mubr.f32.gmra.mxu0 %v445
        %v569 = vpop.f32.mrf.mxu0
        %v570 = vadd.f32 %v466, %v569
        %v571 = vpop.f32.mrf.mxu0
        %572 = vmatprep.mubr.f32.mxu0 0.0
        %573 = vmatmul.mubr.f32.gmra.mxu0 %v446
        %v574 = vpop.f32.mrf.mxu0
        %v575 = vadd.f32 %v466, %v574
        %v576 = vpop.f32.mrf.mxu0
        %577 = vmatprep.mubr.f32.mxu0 0.0
        %578 = vmatmul.mubr.f32.gmra.mxu0 %v447
        %v579 = vpop.f32.mrf.mxu0
        %v580 = vadd.f32 %v466, %v579
        %v581 = vpop.f32.mrf.mxu0
        %582 = vmatprep.mubr.f32.mxu0 0.0
        %583 = vmatmul.mubr.f32.gmra.mxu0 %v448
        %v584 = vpop.f32.mrf.mxu0
        %v585 = vadd.f32 %v466, %v584
        %v586 = vpop.f32.mrf.mxu0
        %587 = vmatprep.mubr.f32.mxu0 0.0
        %588 = vmatmul.mubr.f32.gmra.mxu0 %v449
        %v589 = vpop.f32.mrf.mxu0
        %v590 = vadd.f32 %v466, %v589
        %v591 = vpop.f32.mrf.mxu0
        %592 = vmatprep.mubr.f32.mxu0 0.0
        %593 = vmatmul.mubr.f32.gmra.mxu0 %v450
        %v594 = vpop.f32.mrf.mxu0
        %v595 = vadd.f32 %v466, %v594
        %v596 = vpop.f32.mrf.mxu0
        %597 = vmatprep.mubr.f32.mxu0 0.0
        %598 = vmatmul.mubr.f32.gmra.mxu0 %v451
        %v599 = vpop.f32.mrf.mxu0
        %v600 = vadd.f32 %v466, %v599
        %v601 = vpop.f32.mrf.mxu0
        %602 = vmatprep.mubr.f32.mxu0 0.0
        %603 = vmatmul.mubr.f32.gmra.mxu0 %v452
        %v604 = vpop.f32.mrf.mxu0
        %v605 = vadd.f32 %v466, %v604
        %v606 = vpop.f32.mrf.mxu0
        %607 = vmatprep.mubr.f32.mxu0 0.0
        %608 = vmatmul.mubr.f32.gmra.mxu0 %v453
        %v609 = vpop.f32.mrf.mxu0
        %v610 = vadd.f32 %v466, %v609
        %v611 = vpop.f32.mrf.mxu0
        %612 = vmatprep.mubr.f32.mxu0 0.0
        %613 = vmatmul.mubr.f32.gmra.mxu0 %v454
        %v614 = vpop.f32.mrf.mxu0
        %v615 = vadd.f32 %v466, %v614
        %v616 = vpop.f32.mrf.mxu0
        %617 = vmatprep.mubr.f32.mxu0 0.0
        %618 = vmatmul.mubr.f32.gmra.mxu0 %v455
        %v619 = vpop.f32.mrf.mxu0
        %v620 = vadd.f32 %v466, %v619
        %v621 = vpop.f32.mrf.mxu0
        %622 = vmatprep.mubr.f32.mxu0 0.0
        %623 = vmatmul.mubr.f32.gmra.mxu0 %v456
        %v624 = vpop.f32.mrf.mxu0
        %v625 = vadd.f32 %v466, %v624
        %v626 = vpop.f32.mrf.mxu0
        %627 = vmatprep.mubr.f32.mxu0 0.0
        %628 = vmatmul.mubr.f32.gmra.mxu0 %v457
        %v629 = vpop.f32.mrf.mxu0
        %v630 = vadd.f32 %v466, %v629
        %v631 = vpop.f32.mrf.mxu0
        %632 = vmatprep.mubr.f32.mxu0 0.0
        %633 = vmatmul.mubr.f32.gmra.mxu0 %v458
        %v634 = vpop.f32.mrf.mxu0
        %v635 = vadd.f32 %v466, %v634
        %v636 = vpop.f32.mrf.mxu0
        %637 = vmatprep.mubr.f32.mxu0 0.0
        %638 = vmatmul.mubr.f32.gmra.mxu0 %v459
        %v639 = vpop.f32.mrf.mxu0
        %v640 = vadd.f32 %v466, %v639
        %v641 = vpop.f32.mrf.mxu0
        %642 = vmatprep.mubr.f32.mxu0 0.0
        %643 = vmatmul.mubr.f32.gmra.mxu0 %v460
        %v644 = vpop.f32.mrf.mxu0
        %v645 = vadd.f32 %v466, %v644
        %v646 = vpop.f32.mrf.mxu0
        %647 = vmatprep.mubr.f32.mxu0 0.0
        %648 = vmatmul.mubr.f32.gmra.mxu0 %v461
        %v649 = vpop.f32.mrf.mxu0
        %v650 = vadd.f32 %v466, %v649
        %v651 = vpop.f32.mrf.mxu0
        %652 = vdwg.mxu0
        %v653 = vmax.f32 %v535, 0.0
        %v654 = vmax.f32 %v540, 0.0
        %v655 = vmax.f32 %v545, 0.0
        %v656 = vmax.f32 %v550, 0.0
        %v657 = vmax.f32 %v555, 0.0
        %v658 = vmax.f32 %v560, 0.0
        %v659 = vmax.f32 %v565, 0.0
        %v660 = vmax.f32 %v570, 0.0
        %v661 = vmax.f32 %v575, 0.0
        %v662 = vmax.f32 %v580, 0.0
        %v663 = vmax.f32 %v585, 0.0
        %v664 = vmax.f32 %v590, 0.0
        %v665 = vmax.f32 %v595, 0.0
        %v666 = vmax.f32 %v600, 0.0
        %v667 = vmax.f32 %v605, 0.0
        %v668 = vmax.f32 %v610, 0.0
        %v669 = vmax.f32 %v615, 0.0
        %v670 = vmax.f32 %v620, 0.0
        %v671 = vmax.f32 %v625, 0.0
        %v672 = vmax.f32 %v630, 0.0
        %v673 = vmax.f32 %v635, 0.0
        %v674 = vmax.f32 %v640, 0.0
        %v675 = vmax.f32 %v645, 0.0
        %v676 = vmax.f32 %v650, 0.0
        %v677 = vmin.f32 %v653, 6.0
        %v678 = vmin.f32 %v654, 6.0
        %v679 = vmin.f32 %v655, 6.0
        %v680 = vmin.f32 %v656, 6.0
        %v681 = vmin.f32 %v657, 6.0
        %v682 = vmin.f32 %v658, 6.0
        %v683 = vmin.f32 %v659, 6.0
        %v684 = vmin.f32 %v660, 6.0
        %v685 = vmin.f32 %v661, 6.0
        %v686 = vmin.f32 %v662, 6.0
        %v687 = vmin.f32 %v663, 6.0
        %v688 = vmin.f32 %v664, 6.0
        %v689 = vmin.f32 %v665, 6.0
        %v690 = vmin.f32 %v666, 6.0
        %v691 = vmin.f32 %v667, 6.0
        %v692 = vmin.f32 %v668, 6.0
        %v693 = vmin.f32 %v669, 6.0
        %v694 = vmin.f32 %v670, 6.0
        %v695 = vmin.f32 %v671, 6.0
        %v696 = vmin.f32 %v672, 6.0
        %v697 = vmin.f32 %v673, 6.0
        %v698 = vmin.f32 %v674, 6.0
        %v699 = vmin.f32 %v675, 6.0
        %v700 = vmin.f32 %v676, 6.0
        %v701 = vstv %s409
        %v702 = vadd.s32 %v701, 1
        %v703 = vadd.s32 %v701, 2
        %v704 = vadd.s32 %v701, 3
        %v705 = vadd.s32 %v701, 4
        %v706 = vadd.s32 %v701, 5
        %v707 = vadd.s32 %v701, 6
        %v708 = vadd.s32 %v701, 7
        %v709 = vlaneseq
        %v710 = vshrl.u32 %v709, 7
        %v711 = vadd.s32 %v710, 8
        %v712 = vadd.s32 %v710, 16
        %vm713 = vcmp.ge.s32.totalorder %v701, 1
        %vm714 = vcmp.ge.s32.totalorder %v702, 1
        %vm715 = vcmp.ge.s32.totalorder %v703, 1
        %vm716 = vcmp.ge.s32.totalorder %v704, 1
        %vm717 = vcmp.ge.s32.totalorder %v705, 1
        %vm718 = vcmp.ge.s32.totalorder %v706, 1
        %vm719 = vcmp.ge.s32.totalorder %v707, 1
        %vm720 = vcmp.ge.s32.totalorder %v708, 1
        %vm721 = vcmp.le.s32.totalorder %v701, 16
        %vm722 = vcmp.le.s32.totalorder %v702, 16
        %vm723 = vcmp.le.s32.totalorder %v703, 16
        %vm724 = vcmp.le.s32.totalorder %v704, 16
        %vm725 = vcmp.le.s32.totalorder %v705, 16
        %vm726 = vcmp.le.s32.totalorder %v706, 16
        %vm727 = vcmp.le.s32.totalorder %v707, 16
        %vm728 = vcmp.le.s32.totalorder %v708, 16
        %vm729 = vmand %vm713, %vm721
        %vm730 = vmand %vm714, %vm722
        %vm731 = vmand %vm715, %vm723
        %vm732 = vmand %vm716, %vm724
        %vm733 = vmand %vm717, %vm725
        %vm734 = vmand %vm718, %vm726
        %vm735 = vmand %vm719, %vm727
        %vm736 = vmand %vm720, %vm728
        %vm737 = vcmp.ge.s32.totalorder %v710, 1
        %vm738 = vcmp.ge.s32.totalorder %v711, 1
        %vm739 = vcmp.ge.s32.totalorder %v712, 1
        %v740 = vsel %vm729, 1, 0
        %v741 = vsel %vm730, 1, 0
        %v742 = vsel %vm731, 1, 0
        %v743 = vsel %vm732, 1, 0
        %v744 = vsel %vm733, 1, 0
        %v745 = vsel %vm734, 1, 0
        %v746 = vsel %vm735, 1, 0
        %v747 = vsel %vm736, 1, 0
        %vm748 = vcmp.eq.s32.totalorder %v740, 1
        %vm749 = vcmp.eq.s32.totalorder %v741, 1
        %vm750 = vcmp.eq.s32.totalorder %v742, 1
        %vm751 = vcmp.eq.s32.totalorder %v743, 1
        %vm752 = vcmp.eq.s32.totalorder %v744, 1
        %vm753 = vcmp.eq.s32.totalorder %v745, 1
        %vm754 = vcmp.eq.s32.totalorder %v746, 1
        %vm755 = vcmp.eq.s32.totalorder %v747, 1
        %v756 = vsel %vm737, 1, 0
        %v757 = vsel %vm738, 1, 0
        %v758 = vsel %vm739, 1, 0
        %vm759 = vcmp.eq.s32.totalorder %v756, 1
        %vm760 = vcmp.eq.s32.totalorder %v757, 1
        %vm761 = vcmp.eq.s32.totalorder %v758, 1
        %vm762 = vmand %vm748, %vm759
        %vm763 = vmand %vm748, %vm760
        %vm764 = vmand %vm748, %vm761
        %vm765 = vmand %vm749, %vm759
        %vm766 = vmand %vm749, %vm760
        %vm767 = vmand %vm749, %vm761
        %vm768 = vmand %vm750, %vm759
        %vm769 = vmand %vm750, %vm760
        %vm770 = vmand %vm750, %vm761
        %vm771 = vmand %vm751, %vm759
        %vm772 = vmand %vm751, %vm760
        %vm773 = vmand %vm751, %vm761
        %vm774 = vmand %vm752, %vm759
        %vm775 = vmand %vm752, %vm760
        %vm776 = vmand %vm752, %vm761
        %vm777 = vmand %vm753, %vm759
        %vm778 = vmand %vm753, %vm760
        %vm779 = vmand %vm753, %vm761
        %vm780 = vmand %vm754, %vm759
        %vm781 = vmand %vm754, %vm760
        %vm782 = vmand %vm754, %vm761
        %vm783 = vmand %vm755, %vm759
        %vm784 = vmand %vm755, %vm760
        %vm785 = vmand %vm755, %vm761
        %vm786 = vcmp.le.s32.totalorder %v710, 16
        %vm787 = vcmp.le.s32.totalorder %v711, 16
        %vm788 = vcmp.le.s32.totalorder %v712, 16
        %v789 = vsel %vm786, 1, 0
        %v790 = vsel %vm787, 1, 0
        %v791 = vsel %vm788, 1, 0
        %vm792 = vcmp.eq.s32.totalorder %v789, 1
        %vm793 = vcmp.eq.s32.totalorder %v790, 1
        %vm794 = vcmp.eq.s32.totalorder %v791, 1
        %vm795 = vmand %vm762, %vm792
        %vm796 = vmand %vm763, %vm793
        %vm797 = vmand %vm764, %vm794
        %vm798 = vmand %vm765, %vm792
        %vm799 = vmand %vm766, %vm793
        %vm800 = vmand %vm767, %vm794
        %vm801 = vmand %vm768, %vm792
        %vm802 = vmand %vm769, %vm793
        %vm803 = vmand %vm770, %vm794
        %vm804 = vmand %vm771, %vm792
        %vm805 = vmand %vm772, %vm793
        %vm806 = vmand %vm773, %vm794
        %vm807 = vmand %vm774, %vm792
        %vm808 = vmand %vm775, %vm793
        %vm809 = vmand %vm776, %vm794
        %vm810 = vmand %vm777, %vm792
        %vm811 = vmand %vm778, %vm793
        %vm812 = vmand %vm779, %vm794
        %vm813 = vmand %vm780, %vm792
        %vm814 = vmand %vm781, %vm793
        %vm815 = vmand %vm782, %vm794
        %vm816 = vmand %vm783, %vm792
        %vm817 = vmand %vm784, %vm793
        %vm818 = vmand %vm785, %vm794
        %v819 = vsel %vm795, 1, 0
        %v820 = vsel %vm796, 1, 0
        %v821 = vsel %vm797, 1, 0
        %v822 = vsel %vm798, 1, 0
        %v823 = vsel %vm799, 1, 0
        %v824 = vsel %vm800, 1, 0
        %v825 = vsel %vm801, 1, 0
        %v826 = vsel %vm802, 1, 0
        %v827 = vsel %vm803, 1, 0
        %v828 = vsel %vm804, 1, 0
        %v829 = vsel %vm805, 1, 0
        %v830 = vsel %vm806, 1, 0
        %v831 = vsel %vm807, 1, 0
        %v832 = vsel %vm808, 1, 0
        %v833 = vsel %vm809, 1, 0
        %v834 = vsel %vm810, 1, 0
        %v835 = vsel %vm811, 1, 0
        %v836 = vsel %vm812, 1, 0
        %v837 = vsel %vm813, 1, 0
        %v838 = vsel %vm814, 1, 0
        %v839 = vsel %vm815, 1, 0
        %v840 = vsel %vm816, 1, 0
        %v841 = vsel %vm817, 1, 0
        %v842 = vsel %vm818, 1, 0
        %vm843 = vcmp.eq.s32.totalorder %v819, 1
        %vm844 = vcmp.eq.s32.totalorder %v820, 1
        %vm845 = vcmp.eq.s32.totalorder %v821, 1
        %vm846 = vcmp.eq.s32.totalorder %v822, 1
        %vm847 = vcmp.eq.s32.totalorder %v823, 1
        %vm848 = vcmp.eq.s32.totalorder %v824, 1
        %vm849 = vcmp.eq.s32.totalorder %v825, 1
        %vm850 = vcmp.eq.s32.totalorder %v826, 1
        %vm851 = vcmp.eq.s32.totalorder %v827, 1
        %vm852 = vcmp.eq.s32.totalorder %v828, 1
        %vm853 = vcmp.eq.s32.totalorder %v829, 1
        %vm854 = vcmp.eq.s32.totalorder %v830, 1
        %vm855 = vcmp.eq.s32.totalorder %v831, 1
        %vm856 = vcmp.eq.s32.totalorder %v832, 1
        %vm857 = vcmp.eq.s32.totalorder %v833, 1
        %vm858 = vcmp.eq.s32.totalorder %v834, 1
        %vm859 = vcmp.eq.s32.totalorder %v835, 1
        %vm860 = vcmp.eq.s32.totalorder %v836, 1
        %vm861 = vcmp.eq.s32.totalorder %v837, 1
        %vm862 = vcmp.eq.s32.totalorder %v838, 1
        %vm863 = vcmp.eq.s32.totalorder %v839, 1
        %vm864 = vcmp.eq.s32.totalorder %v840, 1
        %vm865 = vcmp.eq.s32.totalorder %v841, 1
        %vm866 = vcmp.eq.s32.totalorder %v842, 1
        %v867 = vsel %vm843, %v677, 0.0
        %v868 = vsel %vm844, %v678, 0.0
        %v869 = vsel %vm845, %v679, 0.0
        %v870 = vsel %vm846, %v680, 0.0
        %v871 = vsel %vm847, %v681, 0.0
        %v872 = vsel %vm848, %v682, 0.0
        %v873 = vsel %vm849, %v683, 0.0
        %v874 = vsel %vm850, %v684, 0.0
        %v875 = vsel %vm851, %v685, 0.0
        %v876 = vsel %vm852, %v686, 0.0
        %v877 = vsel %vm853, %v687, 0.0
        %v878 = vsel %vm854, %v688, 0.0
        %v879 = vsel %vm855, %v689, 0.0
        %v880 = vsel %vm856, %v690, 0.0
        %v881 = vsel %vm857, %v691, 0.0
        %v882 = vsel %vm858, %v692, 0.0
        %v883 = vsel %vm859, %v693, 0.0
        %v884 = vsel %vm860, %v694, 0.0
        %v885 = vsel %vm861, %v695, 0.0
        %v886 = vsel %vm862, %v696, 0.0
        %v887 = vsel %vm863, %v697, 0.0
        %v888 = vsel %vm864, %v698, 0.0
        %v889 = vsel %vm865, %v699, 0.0
        %v890 = vsel %vm866, %v700, 0.0
        %v891 = vlaneseq
        %v892 = vshrl.u32 %v891, 7
        %v893 = vsub.s32 0, %v892
        %v894 = vrot.slane %v433, %v893
        %v895 = vmul.f32 %v867, %v894
        %v896 = vmul.f32 %v868, %v894
        %v897 = vmul.f32 %v870, %v894
        %v898 = vmul.f32 %v871, %v894
        %v899 = vmul.f32 %v873, %v894
        %v900 = vmul.f32 %v874, %v894
        %v901 = vmul.f32 %v876, %v894
        %v902 = vmul.f32 %v877, %v894
        %v903 = vmul.f32 %v879, %v894
        %v904 = vmul.f32 %v880, %v894
        %v905 = vmul.f32 %v882, %v894
        %v906 = vmul.f32 %v883, %v894
        %v907 = vadd.f32 %v895, 0.0
        %v908 = vadd.f32 %v896, 0.0
        %v909 = vadd.f32 %v897, 0.0
        %v910 = vadd.f32 %v898, 0.0
        %v911 = vadd.f32 %v899, 0.0
        %v912 = vadd.f32 %v900, 0.0
        %v913 = vadd.f32 %v901, 0.0
        %v914 = vadd.f32 %v902, 0.0
        %v915 = vadd.f32 %v903, 0.0
        %v916 = vadd.f32 %v904, 0.0
        %v917 = vadd.f32 %v905, 0.0
        %v918 = vadd.f32 %v906, 0.0
        %v919 = vlaneseq
        %v920 = vshrl.u32 %v919, 7
        %v921 = vsub.s32 1, %v920
        %v922 = vrot.slane %v433, %v921
        %v923 = vmul.f32 %v867, %v922
        %v924 = vmul.f32 %v868, %v922
        %v925 = vmul.f32 %v869, %v922
        %v926 = vmul.f32 %v870, %v922
        %v927 = vmul.f32 %v871, %v922
        %v928 = vmul.f32 %v872, %v922
        %v929 = vmul.f32 %v873, %v922
        %v930 = vmul.f32 %v874, %v922
        %v931 = vmul.f32 %v875, %v922
        %v932 = vmul.f32 %v876, %v922
        %v933 = vmul.f32 %v877, %v922
        %v934 = vmul.f32 %v878, %v922
        %v935 = vmul.f32 %v879, %v922
        %v936 = vmul.f32 %v880, %v922
        %v937 = vmul.f32 %v881, %v922
        %v938 = vmul.f32 %v882, %v922
        %v939 = vmul.f32 %v883, %v922
        %v940 = vmul.f32 %v884, %v922
        %vm959 = vcmask 1046528
        %v960 = vrot.slane %v923, 1
        %v961 = vrot.slane %v924, 1
        %v962 = vsel %vm959, %v960, %v961
        %v963 = vrot.slane %v925, 1
        %v964 = vsel %vm959, %v961, %v963
        %v965 = vrot.slane %v926, 1
        %v966 = vrot.slane %v927, 1
        %v967 = vsel %vm959, %v965, %v966
        %v968 = vrot.slane %v928, 1
        %v969 = vsel %vm959, %v966, %v968
        %v970 = vrot.slane %v929, 1
        %v971 = vrot.slane %v930, 1
        %v972 = vsel %vm959, %v970, %v971
        %v973 = vrot.slane %v931, 1
        %v974 = vsel %vm959, %v971, %v973
        %v975 = vrot.slane %v932, 1
        %v976 = vrot.slane %v933, 1
        %v977 = vsel %vm959, %v975, %v976
        %v978 = vrot.slane %v934, 1
        %v979 = vsel %vm959, %v976, %v978
        %v980 = vrot.slane %v935, 1
        %v981 = vrot.slane %v936, 1
        %v982 = vsel %vm959, %v980, %v981
        %v983 = vrot.slane %v937, 1
        %v984 = vsel %vm959, %v981, %v983
        %v985 = vrot.slane %v938, 1
        %v986 = vrot.slane %v939, 1
        %v987 = vsel %vm959, %v985, %v986
        %v988 = vrot.slane %v940, 1
        %v989 = vsel %vm959, %v986, %v988
        %v1002 = vadd.f32 %v907, %v962
        %v1003 = vadd.f32 %v908, %v964
        %v1004 = vadd.f32 %v909, %v967
        %v1005 = vadd.f32 %v910, %v969
        %v1006 = vadd.f32 %v911, %v972
        %v1007 = vadd.f32 %v912, %v974
        %v1008 = vadd.f32 %v913, %v977
        %v1009 = vadd.f32 %v914, %v979
        %v1010 = vadd.f32 %v915, %v982
        %v1011 = vadd.f32 %v916, %v984
        %v1012 = vadd.f32 %v917, %v987
        %v1013 = vadd.f32 %v918, %v989
        %v1014 = vlaneseq
        %v1015 = vshrl.u32 %v1014, 7
        %v1016 = vsub.s32 2, %v1015
        %v1017 = vrot.slane %v433, %v1016
        %v1018 = vmul.f32 %v867, %v1017
        %v1019 = vmul.f32 %v868, %v1017
        %v1020 = vmul.f32 %v869, %v1017
        %v1021 = vmul.f32 %v870, %v1017
        %v1022 = vmul.f32 %v871, %v1017
        %v1023 = vmul.f32 %v872, %v1017
        %v1024 = vmul.f32 %v873, %v1017
        %v1025 = vmul.f32 %v874, %v1017
        %v1026 = vmul.f32 %v875, %v1017
        %v1027 = vmul.f32 %v876, %v1017
        %v1028 = vmul.f32 %v877, %v1017
        %v1029 = vmul.f32 %v878, %v1017
        %v1030 = vmul.f32 %v879, %v1017
        %v1031 = vmul.f32 %v880, %v1017
        %v1032 = vmul.f32 %v881, %v1017
        %v1033 = vmul.f32 %v882, %v1017
        %v1034 = vmul.f32 %v883, %v1017
        %v1035 = vmul.f32 %v884, %v1017
        %vm1054 = vcmask 1045504
        %v1055 = vrot.slane %v1018, 2
        %v1056 = vrot.slane %v1019, 2
        %v1057 = vsel %vm1054, %v1055, %v1056
        %v1058 = vrot.slane %v1020, 2
        %v1059 = vsel %vm1054, %v1056, %v1058
        %v1060 = vrot.slane %v1021, 2
        %v1061 = vrot.slane %v1022, 2
        %v1062 = vsel %vm1054, %v1060, %v1061
        %v1063 = vrot.slane %v1023, 2
        %v1064 = vsel %vm1054, %v1061, %v1063
        %v1065 = vrot.slane %v1024, 2
        %v1066 = vrot.slane %v1025, 2
        %v1067 = vsel %vm1054, %v1065, %v1066
        %v1068 = vrot.slane %v1026, 2
        %v1069 = vsel %vm1054, %v1066, %v1068
        %v1070 = vrot.slane %v1027, 2
        %v1071 = vrot.slane %v1028, 2
        %v1072 = vsel %vm1054, %v1070, %v1071
        %v1073 = vrot.slane %v1029, 2
        %v1074 = vsel %vm1054, %v1071, %v1073
        %v1075 = vrot.slane %v1030, 2
        %v1076 = vrot.slane %v1031, 2
        %v1077 = vsel %vm1054, %v1075, %v1076
        %v1078 = vrot.slane %v1032, 2
        %v1079 = vsel %vm1054, %v1076, %v1078
        %v1080 = vrot.slane %v1033, 2
        %v1081 = vrot.slane %v1034, 2
        %v1082 = vsel %vm1054, %v1080, %v1081
        %v1083 = vrot.slane %v1035, 2
        %v1084 = vsel %vm1054, %v1081, %v1083
        %v1097 = vadd.f32 %v1002, %v1057
        %v1098 = vadd.f32 %v1003, %v1059
        %v1099 = vadd.f32 %v1004, %v1062
        %v1100 = vadd.f32 %v1005, %v1064
        %v1101 = vadd.f32 %v1006, %v1067
        %v1102 = vadd.f32 %v1007, %v1069
        %v1103 = vadd.f32 %v1008, %v1072
        %v1104 = vadd.f32 %v1009, %v1074
        %v1105 = vadd.f32 %v1010, %v1077
        %v1106 = vadd.f32 %v1011, %v1079
        %v1107 = vadd.f32 %v1012, %v1082
        %v1108 = vadd.f32 %v1013, %v1084
        %v1109 = vlaneseq
        %v1110 = vshrl.u32 %v1109, 7
        %v1111 = vsub.s32 0, %v1110
        %v1112 = vrot.slane %v434, %v1111
        %v1113 = vmul.f32 %v870, %v1112
        %v1114 = vmul.f32 %v871, %v1112
        %v1115 = vmul.f32 %v873, %v1112
        %v1116 = vmul.f32 %v874, %v1112
        %v1117 = vmul.f32 %v876, %v1112
        %v1118 = vmul.f32 %v877, %v1112
        %v1119 = vmul.f32 %v879, %v1112
        %v1120 = vmul.f32 %v880, %v1112
        %v1121 = vmul.f32 %v882, %v1112
        %v1122 = vmul.f32 %v883, %v1112
        %v1123 = vmul.f32 %v885, %v1112
        %v1124 = vmul.f32 %v886, %v1112
        %v1125 = vadd.f32 %v1097, %v1113
        %v1126 = vadd.f32 %v1098, %v1114
        %v1127 = vadd.f32 %v1099, %v1115
        %v1128 = vadd.f32 %v1100, %v1116
        %v1129 = vadd.f32 %v1101, %v1117
        %v1130 = vadd.f32 %v1102, %v1118
        %v1131 = vadd.f32 %v1103, %v1119
        %v1132 = vadd.f32 %v1104, %v1120
        %v1133 = vadd.f32 %v1105, %v1121
        %v1134 = vadd.f32 %v1106, %v1122
        %v1135 = vadd.f32 %v1107, %v1123
        %v1136 = vadd.f32 %v1108, %v1124
        %v1137 = vlaneseq
        %v1138 = vshrl.u32 %v1137, 7
        %v1139 = vsub.s32 1, %v1138
        %v1140 = vrot.slane %v434, %v1139
        %v1141 = vmul.f32 %v870, %v1140
        %v1142 = vmul.f32 %v871, %v1140
        %v1143 = vmul.f32 %v872, %v1140
        %v1144 = vmul.f32 %v873, %v1140
        %v1145 = vmul.f32 %v874, %v1140
        %v1146 = vmul.f32 %v875, %v1140
        %v1147 = vmul.f32 %v876, %v1140
        %v1148 = vmul.f32 %v877, %v1140
        %v1149 = vmul.f32 %v878, %v1140
        %v1150 = vmul.f32 %v879, %v1140
        %v1151 = vmul.f32 %v880, %v1140
        %v1152 = vmul.f32 %v881, %v1140
        %v1153 = vmul.f32 %v882, %v1140
        %v1154 = vmul.f32 %v883, %v1140
        %v1155 = vmul.f32 %v884, %v1140
        %v1156 = vmul.f32 %v885, %v1140
        %v1157 = vmul.f32 %v886, %v1140
        %v1158 = vmul.f32 %v887, %v1140
        %v1177 = vrot.slane %v1141, 1
        %v1178 = vrot.slane %v1142, 1
        %v1179 = vsel %vm959, %v1177, %v1178
        %v1180 = vrot.slane %v1143, 1
        %v1181 = vsel %vm959, %v1178, %v1180
        %v1182 = vrot.slane %v1144, 1
        %v1183 = vrot.slane %v1145, 1
        %v1184 = vsel %vm959, %v1182, %v1183
        %v1185 = vrot.slane %v1146, 1
        %v1186 = vsel %vm959, %v1183, %v1185
        %v1187 = vrot.slane %v1147, 1
        %v1188 = vrot.slane %v1148, 1
        %v1189 = vsel %vm959, %v1187, %v1188
        %v1190 = vrot.slane %v1149, 1
        %v1191 = vsel %vm959, %v1188, %v1190
        %v1192 = vrot.slane %v1150, 1
        %v1193 = vrot.slane %v1151, 1
        %v1194 = vsel %vm959, %v1192, %v1193
        %v1195 = vrot.slane %v1152, 1
        %v1196 = vsel %vm959, %v1193, %v1195
        %v1197 = vrot.slane %v1153, 1
        %v1198 = vrot.slane %v1154, 1
        %v1199 = vsel %vm959, %v1197, %v1198
        %v1200 = vrot.slane %v1155, 1
        %v1201 = vsel %vm959, %v1198, %v1200
        %v1202 = vrot.slane %v1156, 1
        %v1203 = vrot.slane %v1157, 1
        %v1204 = vsel %vm959, %v1202, %v1203
        %v1205 = vrot.slane %v1158, 1
        %v1206 = vsel %vm959, %v1203, %v1205
        %v1219 = vadd.f32 %v1125, %v1179
        %v1220 = vadd.f32 %v1126, %v1181
        %v1221 = vadd.f32 %v1127, %v1184
        %v1222 = vadd.f32 %v1128, %v1186
        %v1223 = vadd.f32 %v1129, %v1189
        %v1224 = vadd.f32 %v1130, %v1191
        %v1225 = vadd.f32 %v1131, %v1194
        %v1226 = vadd.f32 %v1132, %v1196
        %v1227 = vadd.f32 %v1133, %v1199
        %v1228 = vadd.f32 %v1134, %v1201
        %v1229 = vadd.f32 %v1135, %v1204
        %v1230 = vadd.f32 %v1136, %v1206
        %v1231 = vlaneseq
        %v1232 = vshrl.u32 %v1231, 7
        %v1233 = vsub.s32 2, %v1232
        %v1234 = vrot.slane %v434, %v1233
        %v1235 = vmul.f32 %v870, %v1234
        %v1236 = vmul.f32 %v871, %v1234
        %v1237 = vmul.f32 %v872, %v1234
        %v1238 = vmul.f32 %v873, %v1234
        %v1239 = vmul.f32 %v874, %v1234
        %v1240 = vmul.f32 %v875, %v1234
        %v1241 = vmul.f32 %v876, %v1234
        %v1242 = vmul.f32 %v877, %v1234
        %v1243 = vmul.f32 %v878, %v1234
        %v1244 = vmul.f32 %v879, %v1234
        %v1245 = vmul.f32 %v880, %v1234
        %v1246 = vmul.f32 %v881, %v1234
        %v1247 = vmul.f32 %v882, %v1234
        %v1248 = vmul.f32 %v883, %v1234
        %v1249 = vmul.f32 %v884, %v1234
        %v1250 = vmul.f32 %v885, %v1234
        %v1251 = vmul.f32 %v886, %v1234
        %v1252 = vmul.f32 %v887, %v1234
        %v1271 = vrot.slane %v1235, 2
        %v1272 = vrot.slane %v1236, 2
        %v1273 = vsel %vm1054, %v1271, %v1272
        %v1274 = vrot.slane %v1237, 2
        %v1275 = vsel %vm1054, %v1272, %v1274
        %v1276 = vrot.slane %v1238, 2
        %v1277 = vrot.slane %v1239, 2
        %v1278 = vsel %vm1054, %v1276, %v1277
        %v1279 = vrot.slane %v1240, 2
        %v1280 = vsel %vm1054, %v1277, %v1279
        %v1281 = vrot.slane %v1241, 2
        %v1282 = vrot.slane %v1242, 2
        %v1283 = vsel %vm1054, %v1281, %v1282
        %v1284 = vrot.slane %v1243, 2
        %v1285 = vsel %vm1054, %v1282, %v1284
        %v1286 = vrot.slane %v1244, 2
        %v1287 = vrot.slane %v1245, 2
        %v1288 = vsel %vm1054, %v1286, %v1287
        %v1289 = vrot.slane %v1246, 2
        %v1290 = vsel %vm1054, %v1287, %v1289
        %v1291 = vrot.slane %v1247, 2
        %v1292 = vrot.slane %v1248, 2
        %v1293 = vsel %vm1054, %v1291, %v1292
        %v1294 = vrot.slane %v1249, 2
        %v1295 = vsel %vm1054, %v1292, %v1294
        %v1296 = vrot.slane %v1250, 2
        %v1297 = vrot.slane %v1251, 2
        %v1298 = vsel %vm1054, %v1296, %v1297
        %v1299 = vrot.slane %v1252, 2
        %v1300 = vsel %vm1054, %v1297, %v1299
        %v1313 = vadd.f32 %v1219, %v1273
        %v1314 = vadd.f32 %v1220, %v1275
        %v1315 = vadd.f32 %v1221, %v1278
        %v1316 = vadd.f32 %v1222, %v1280
        %v1317 = vadd.f32 %v1223, %v1283
        %v1318 = vadd.f32 %v1224, %v1285
        %v1319 = vadd.f32 %v1225, %v1288
        %v1320 = vadd.f32 %v1226, %v1290
        %v1321 = vadd.f32 %v1227, %v1293
        %v1322 = vadd.f32 %v1228, %v1295
        %v1323 = vadd.f32 %v1229, %v1298
        %v1324 = vadd.f32 %v1230, %v1300
        %v1325 = vlaneseq
        %v1326 = vshrl.u32 %v1325, 7
        %v1327 = vsub.s32 0, %v1326
        %v1328 = vrot.slane %v435, %v1327
        %v1329 = vmul.f32 %v873, %v1328
        %v1330 = vmul.f32 %v874, %v1328
        %v1331 = vmul.f32 %v876, %v1328
        %v1332 = vmul.f32 %v877, %v1328
        %v1333 = vmul.f32 %v879, %v1328
        %v1334 = vmul.f32 %v880, %v1328
        %v1335 = vmul.f32 %v882, %v1328
        %v1336 = vmul.f32 %v883, %v1328
        %v1337 = vmul.f32 %v885, %v1328
        %v1338 = vmul.f32 %v886, %v1328
        %v1339 = vmul.f32 %v888, %v1328
        %v1340 = vmul.f32 %v889, %v1328
        %v1341 = vadd.f32 %v1313, %v1329
        %v1342 = vadd.f32 %v1314, %v1330
        %v1343 = vadd.f32 %v1315, %v1331
        %v1344 = vadd.f32 %v1316, %v1332
        %v1345 = vadd.f32 %v1317, %v1333
        %v1346 = vadd.f32 %v1318, %v1334
        %v1347 = vadd.f32 %v1319, %v1335
        %v1348 = vadd.f32 %v1320, %v1336
        %v1349 = vadd.f32 %v1321, %v1337
        %v1350 = vadd.f32 %v1322, %v1338
        %v1351 = vadd.f32 %v1323, %v1339
        %v1352 = vadd.f32 %v1324, %v1340
        %v1353 = vlaneseq
        %v1354 = vshrl.u32 %v1353, 7
        %v1355 = vsub.s32 1, %v1354
        %v1356 = vrot.slane %v435, %v1355
        %v1357 = vmul.f32 %v873, %v1356
        %v1358 = vmul.f32 %v874, %v1356
        %v1359 = vmul.f32 %v875, %v1356
        %v1360 = vmul.f32 %v876, %v1356
        %v1361 = vmul.f32 %v877, %v1356
        %v1362 = vmul.f32 %v878, %v1356
        %v1363 = vmul.f32 %v879, %v1356
        %v1364 = vmul.f32 %v880, %v1356
        %v1365 = vmul.f32 %v881, %v1356
        %v1366 = vmul.f32 %v882, %v1356
        %v1367 = vmul.f32 %v883, %v1356
        %v1368 = vmul.f32 %v884, %v1356
        %v1369 = vmul.f32 %v885, %v1356
        %v1370 = vmul.f32 %v886, %v1356
        %v1371 = vmul.f32 %v887, %v1356
        %v1372 = vmul.f32 %v888, %v1356
        %v1373 = vmul.f32 %v889, %v1356
        %v1374 = vmul.f32 %v890, %v1356
        %v1393 = vrot.slane %v1357, 1
        %v1394 = vrot.slane %v1358, 1
        %v1395 = vsel %vm959, %v1393, %v1394
        %v1396 = vrot.slane %v1359, 1
        %v1397 = vsel %vm959, %v1394, %v1396
        %v1398 = vrot.slane %v1360, 1
        %v1399 = vrot.slane %v1361, 1
        %v1400 = vsel %vm959, %v1398, %v1399
        %v1401 = vrot.slane %v1362, 1
        %v1402 = vsel %vm959, %v1399, %v1401
        %v1403 = vrot.slane %v1363, 1
        %v1404 = vrot.slane %v1364, 1
        %v1405 = vsel %vm959, %v1403, %v1404
        %v1406 = vrot.slane %v1365, 1
        %v1407 = vsel %vm959, %v1404, %v1406
        %v1408 = vrot.slane %v1366, 1
        %v1409 = vrot.slane %v1367, 1
        %v1410 = vsel %vm959, %v1408, %v1409
        %v1411 = vrot.slane %v1368, 1
        %v1412 = vsel %vm959, %v1409, %v1411
        %v1413 = vrot.slane %v1369, 1
        %v1414 = vrot.slane %v1370, 1
        %v1415 = vsel %vm959, %v1413, %v1414
        %v1416 = vrot.slane %v1371, 1
        %v1417 = vsel %vm959, %v1414, %v1416
        %v1418 = vrot.slane %v1372, 1
        %v1419 = vrot.slane %v1373, 1
        %v1420 = vsel %vm959, %v1418, %v1419
        %v1421 = vrot.slane %v1374, 1
        %v1422 = vsel %vm959, %v1419, %v1421
        %v1435 = vadd.f32 %v1341, %v1395
        %v1436 = vadd.f32 %v1342, %v1397
        %v1437 = vadd.f32 %v1343, %v1400
        %v1438 = vadd.f32 %v1344, %v1402
        %v1439 = vadd.f32 %v1345, %v1405
        %v1440 = vadd.f32 %v1346, %v1407
        %v1441 = vadd.f32 %v1347, %v1410
        %v1442 = vadd.f32 %v1348, %v1412
        %v1443 = vadd.f32 %v1349, %v1415
        %v1444 = vadd.f32 %v1350, %v1417
        %v1445 = vadd.f32 %v1351, %v1420
        %v1446 = vadd.f32 %v1352, %v1422
        %v1447 = vlaneseq
        %v1448 = vshrl.u32 %v1447, 7
        %v1449 = vsub.s32 2, %v1448
        %v1450 = vrot.slane %v435, %v1449
        %v1451 = vmul.f32 %v873, %v1450
        %v1452 = vmul.f32 %v874, %v1450
        %v1453 = vmul.f32 %v875, %v1450
        %v1454 = vmul.f32 %v876, %v1450
        %v1455 = vmul.f32 %v877, %v1450
        %v1456 = vmul.f32 %v878, %v1450
        %v1457 = vmul.f32 %v879, %v1450
        %v1458 = vmul.f32 %v880, %v1450
        %v1459 = vmul.f32 %v881, %v1450
        %v1460 = vmul.f32 %v882, %v1450
        %v1461 = vmul.f32 %v883, %v1450
        %v1462 = vmul.f32 %v884, %v1450
        %v1463 = vmul.f32 %v885, %v1450
        %v1464 = vmul.f32 %v886, %v1450
        %v1465 = vmul.f32 %v887, %v1450
        %v1466 = vmul.f32 %v888, %v1450
        %v1467 = vmul.f32 %v889, %v1450
        %v1468 = vmul.f32 %v890, %v1450
        %v1487 = vrot.slane %v1451, 2
        %v1488 = vrot.slane %v1452, 2
        %v1489 = vsel %vm1054, %v1487, %v1488
        %v1490 = vrot.slane %v1453, 2
        %v1491 = vsel %vm1054, %v1488, %v1490
        %v1492 = vrot.slane %v1454, 2
        %v1493 = vrot.slane %v1455, 2
        %v1494 = vsel %vm1054, %v1492, %v1493
        %v1495 = vrot.slane %v1456, 2
        %v1496 = vsel %vm1054, %v1493, %v1495
        %v1497 = vrot.slane %v1457, 2
        %v1498 = vrot.slane %v1458, 2
        %v1499 = vsel %vm1054, %v1497, %v1498
        %v1500 = vrot.slane %v1459, 2
        %v1501 = vsel %vm1054, %v1498, %v1500
        %v1502 = vrot.slane %v1460, 2
        %v1503 = vrot.slane %v1461, 2
        %v1504 = vsel %vm1054, %v1502, %v1503
        %v1505 = vrot.slane %v1462, 2
        %v1506 = vsel %vm1054, %v1503, %v1505
        %v1507 = vrot.slane %v1463, 2
        %v1508 = vrot.slane %v1464, 2
        %v1509 = vsel %vm1054, %v1507, %v1508
        %v1510 = vrot.slane %v1465, 2
        %v1511 = vsel %vm1054, %v1508, %v1510
        %v1512 = vrot.slane %v1466, 2
        %v1513 = vrot.slane %v1467, 2
        %v1514 = vsel %vm1054, %v1512, %v1513
        %v1515 = vrot.slane %v1468, 2
        %v1516 = vsel %vm1054, %v1513, %v1515
        %v1529 = vadd.f32 %v1435, %v1489
        %v1530 = vadd.f32 %v1436, %v1491
        %v1531 = vadd.f32 %v1437, %v1494
        %v1532 = vadd.f32 %v1438, %v1496
        %v1533 = vadd.f32 %v1439, %v1499
        %v1534 = vadd.f32 %v1440, %v1501
        %v1535 = vadd.f32 %v1441, %v1504
        %v1536 = vadd.f32 %v1442, %v1506
        %v1537 = vadd.f32 %v1443, %v1509
        %v1538 = vadd.f32 %v1444, %v1511
        %v1539 = vadd.f32 %v1445, %v1514
        %v1540 = vadd.f32 %v1446, %v1516
        %v1541 = vld [vmem:[%s4] sm:$0x1]
        %v1543 = vlaneseq
        %v1544 = vshrl.u32 %v1543, 7
        %v1545 = vsub.s32 0, %v1544
        %v1546 = vrot.slane %v1541, %v1545
        %v1548 = vadd.f32 %v1529, %v1546
        %v1549 = vadd.f32 %v1530, %v1546
        %v1550 = vadd.f32 %v1531, %v1546
        %v1551 = vadd.f32 %v1532, %v1546
        %v1552 = vadd.f32 %v1533, %v1546
        %v1553 = vadd.f32 %v1534, %v1546
        %v1554 = vadd.f32 %v1535, %v1546
        %v1555 = vadd.f32 %v1536, %v1546
        %v1556 = vadd.f32 %v1537, %v1546
        %v1557 = vadd.f32 %v1538, %v1546
        %v1558 = vadd.f32 %v1539, %v1546
        %v1559 = vadd.f32 %v1540, %v1546
        %v1560 = vmax.f32 %v1548, 0.0
        %v1561 = vmax.f32 %v1549, 0.0
        %v1562 = vmax.f32 %v1550, 0.0
        %v1563 = vmax.f32 %v1551, 0.0
        %v1564 = vmax.f32 %v1552, 0.0
        %v1565 = vmax.f32 %v1553, 0.0
        %v1566 = vmax.f32 %v1554, 0.0
        %v1567 = vmax.f32 %v1555, 0.0
        %v1568 = vmax.f32 %v1556, 0.0
        %v1569 = vmax.f32 %v1557, 0.0
        %v1570 = vmax.f32 %v1558, 0.0
        %v1571 = vmax.f32 %v1559, 0.0
        %v1572 = vmin.f32 %v1560, 6.0
        %v1573 = vmin.f32 %v1561, 6.0
        %v1574 = vmin.f32 %v1562, 6.0
        %v1575 = vmin.f32 %v1563, 6.0
        %v1576 = vmin.f32 %v1564, 6.0
        %v1577 = vmin.f32 %v1565, 6.0
        %v1578 = vmin.f32 %v1566, 6.0
        %v1579 = vmin.f32 %v1567, 6.0
        %v1580 = vmin.f32 %v1568, 6.0
        %v1581 = vmin.f32 %v1569, 6.0
        %v1582 = vmin.f32 %v1570, 6.0
        %v1583 = vmin.f32 %v1571, 6.0
        %v1584 = vld [vmem:[#allocation10] sm:$0xff]
        %v1585 = vld [vmem:[#allocation10 + $0x8] sm:$0xff]
        %v1586 = vld [vmem:[#allocation10 + $0x10] sm:$0xff]
        %v1587 = vld [vmem:[#allocation10 + $0x18] sm:$0xff]
        %v1588 = vld [vmem:[#allocation10 + $0x20] sm:$0xff]
        %v1589 = vld [vmem:[#allocation10 + $0x28] sm:$0xff]
        %v1590 = vld [vmem:[#allocation10 + $0x30] sm:$0xff]
        %v1591 = vld [vmem:[#allocation10 + $0x38] sm:$0xff]
        %v1592 = vld [vmem:[#allocation10 + $0x40] sm:$0xff]
        %v1593 = vld [vmem:[#allocation10 + $0x48] sm:$0xff]
        %v1594 = vld [vmem:[#allocation10 + $0x50] sm:$0xff]
        %v1595 = vld [vmem:[#allocation10 + $0x58] sm:$0xff]
        %v1596 = vld [vmem:[#allocation10 + $0x60] sm:$0xff]
        %v1597 = vld [vmem:[#allocation10 + $0x68] sm:$0xff]
        %v1598 = vld [vmem:[#allocation10 + $0x70] sm:$0xff]
        %v1599 = vld [vmem:[#allocation10 + $0x78] sm:$0xff]
        %v1600 = vld [vmem:[%s6] sm:$0x1]
        %v1602 = vlaneseq
        %v1603 = vshrl.u32 %v1602, 7
        %v1604 = vsub.s32 0, %v1603
        %v1605 = vrot.slane %v1600, %v1604
        %1607 = vmatprep.subr.mxu0 0.0
        %1608 = vmatpush1.msra.mxu0 %v1599
        %1609 = vmatprep.subr.mxu0 0.0
        %1610 = vmatpush1.msra.mxu0 %v1598
        %1611 = vmatprep.subr.mxu0 0.0
        %1612 = vmatpush1.msra.mxu0 %v1597
        %1613 = vmatprep.subr.mxu0 0.0
        %1614 = vmatpush1.msra.mxu0 %v1596
        %1615 = vmatprep.subr.mxu0 0.0
        %1616 = vmatpush1.msra.mxu0 %v1595
        %1617 = vmatprep.subr.mxu0 0.0
        %1618 = vmatpush1.msra.mxu0 %v1594
        %1619 = vmatprep.subr.mxu0 0.0
        %1620 = vmatpush1.msra.mxu0 %v1593
        %1621 = vmatprep.subr.mxu0 0.0
        %1622 = vmatpush1.msra.mxu0 %v1592
        %1623 = vmatprep.subr.mxu0 0.0
        %1624 = vmatpush1.msra.mxu0 %v1591
        %1625 = vmatprep.subr.mxu0 0.0
        %1626 = vmatpush1.msra.mxu0 %v1590
        %1627 = vmatprep.subr.mxu0 0.0
        %1628 = vmatpush1.msra.mxu0 %v1589
        %1629 = vmatprep.subr.mxu0 0.0
        %1630 = vmatpush1.msra.mxu0 %v1588
        %1631 = vmatprep.subr.mxu0 0.0
        %1632 = vmatpush1.msra.mxu0 %v1587
        %1633 = vmatprep.subr.mxu0 0.0
        %1634 = vmatpush1.msra.mxu0 %v1586
        %1635 = vmatprep.subr.mxu0 0.0
        %1636 = vmatpush1.msra.mxu0 %v1585
        %1637 = vmatprep.subr.mxu0 0.0
        %1638 = vmatpush1.msra.mxu0 %v1584
        %1639 = vmatprep.subr.mxu0 0.0
        %1640 = vmatpush2.msra.mxu0 0.0
        %1641 = vmatprep.subr.mxu0 0.0
        %1642 = vmatpush2.msra.mxu0 0.0
        %1643 = vmatprep.subr.mxu0 0.0
        %1644 = vmatpush2.msra.mxu0 0.0
        %1645 = vmatprep.subr.mxu0 0.0
        %1646 = vmatpush2.msra.mxu0 0.0
        %1647 = vmatprep.subr.mxu0 0.0
        %1648 = vmatpush2.msra.mxu0 0.0
        %1649 = vmatprep.subr.mxu0 0.0
        %1650 = vmatpush2.msra.mxu0 0.0
        %1651 = vmatprep.subr.mxu0 0.0
        %1652 = vmatpush2.msra.mxu0 0.0
        %1653 = vmatprep.subr.mxu0 0.0
        %1654 = vmatpush2.msra.mxu0 0.0
        %1655 = vmatprep.subr.mxu0 0.0
        %1656 = vmatpush2.msra.mxu0 0.0
        %1657 = vmatprep.subr.mxu0 0.0
        %1658 = vmatpush2.msra.mxu0 0.0
        %1659 = vmatprep.subr.mxu0 0.0
        %1660 = vmatpush2.msra.mxu0 0.0
        %1661 = vmatprep.subr.mxu0 0.0
        %1662 = vmatpush2.msra.mxu0 0.0
        %1663 = vmatprep.subr.mxu0 0.0
        %1664 = vmatpush2.msra.mxu0 0.0
        %1665 = vmatprep.subr.mxu0 0.0
        %1666 = vmatpush2.msra.mxu0 0.0
        %1667 = vmatprep.subr.mxu0 0.0
        %1668 = vmatpush2.msra.mxu0 0.0
        %1669 = vmatprep.subr.mxu0 0.0
        %1670 = vmatpush2.msra.mxu0 0.0
        %1671 = vmatprep.mubr.f32.mxu0 0.0
        %1672 = vmatmul.mubr.f32.gmra.mxu0 %v1572
        %v1673 = vpop.f32.mrf.mxu0
        %v1674 = vadd.f32 %v1605, %v1673
        %v1675 = vpop.f32.mrf.mxu0
        %1676 = vmatprep.mubr.f32.mxu0 0.0
        %1677 = vmatmul.mubr.f32.gmra.mxu0 %v1573
        %v1678 = vpop.f32.mrf.mxu0
        %v1679 = vadd.f32 %v1605, %v1678
        %v1680 = vpop.f32.mrf.mxu0
        %1681 = vmatprep.mubr.f32.mxu0 0.0
        %1682 = vmatmul.mubr.f32.gmra.mxu0 %v1574
        %v1683 = vpop.f32.mrf.mxu0
        %v1684 = vadd.f32 %v1605, %v1683
        %v1685 = vpop.f32.mrf.mxu0
        %1686 = vmatprep.mubr.f32.mxu0 0.0
        %1687 = vmatmul.mubr.f32.gmra.mxu0 %v1575
        %v1688 = vpop.f32.mrf.mxu0
        %v1689 = vadd.f32 %v1605, %v1688
        %v1690 = vpop.f32.mrf.mxu0
        %1691 = vmatprep.mubr.f32.mxu0 0.0
        %1692 = vmatmul.mubr.f32.gmra.mxu0 %v1576
        %v1693 = vpop.f32.mrf.mxu0
        %v1694 = vadd.f32 %v1605, %v1693
        %v1695 = vpop.f32.mrf.mxu0
        %1696 = vmatprep.mubr.f32.mxu0 0.0
        %1697 = vmatmul.mubr.f32.gmra.mxu0 %v1577
        %v1698 = vpop.f32.mrf.mxu0
        %v1699 = vadd.f32 %v1605, %v1698
        %v1700 = vpop.f32.mrf.mxu0
        %1701 = vmatprep.mubr.f32.mxu0 0.0
        %1702 = vmatmul.mubr.f32.gmra.mxu0 %v1578
        %v1703 = vpop.f32.mrf.mxu0
        %v1704 = vadd.f32 %v1605, %v1703
        %v1705 = vpop.f32.mrf.mxu0
        %1706 = vmatprep.mubr.f32.mxu0 0.0
        %1707 = vmatmul.mubr.f32.gmra.mxu0 %v1579
        %v1708 = vpop.f32.mrf.mxu0
        %v1709 = vadd.f32 %v1605, %v1708
        %v1710 = vpop.f32.mrf.mxu0
        %1711 = vmatprep.mubr.f32.mxu0 0.0
        %1712 = vmatmul.mubr.f32.gmra.mxu0 %v1580
        %v1713 = vpop.f32.mrf.mxu0
        %v1714 = vadd.f32 %v1605, %v1713
        %v1715 = vpop.f32.mrf.mxu0
        %1716 = vmatprep.mubr.f32.mxu0 0.0
        %1717 = vmatmul.mubr.f32.gmra.mxu0 %v1581
        %v1718 = vpop.f32.mrf.mxu0
        %v1719 = vadd.f32 %v1605, %v1718
        %v1720 = vpop.f32.mrf.mxu0
        %1721 = vmatprep.mubr.f32.mxu0 0.0
        %1722 = vmatmul.mubr.f32.gmra.mxu0 %v1582
        %v1723 = vpop.f32.mrf.mxu0
        %v1724 = vadd.f32 %v1605, %v1723
        %v1725 = vpop.f32.mrf.mxu0
        %1726 = vmatprep.mubr.f32.mxu0 0.0
        %1727 = vmatmul.mubr.f32.gmra.mxu0 %v1583
        %v1728 = vpop.f32.mrf.mxu0
        %v1729 = vadd.f32 %v1605, %v1728
        %v1730 = vpop.f32.mrf.mxu0
        %1731 = vdwg.mxu0
        %s1732 = sadd.s32 %s409, 1
        %s1733 = smul.u32 %s1732, 24
        %s1734 = scalar_lea.vmem %s360, %s1733 [#allocation4]
        %v1735 = vld [vmem:[%s1734 + $0x1] sm:$0xff]
        %v1736 = vld [vmem:[%s1734 + $0x9] sm:$0xff]
        %v1737 = vld [vmem:[%s1734 + $0x19] sm:$0xff]
        %v1738 = vld [vmem:[%s1734 + $0x21] sm:$0xff]
        %v1739 = vld [vmem:[%s1734 + $0x31] sm:$0xff]
        %v1740 = vld [vmem:[%s1734 + $0x39] sm:$0xff]
        %v1741 = vld [vmem:[%s1734 + $0x49] sm:$0xff]
        %v1742 = vld [vmem:[%s1734 + $0x51] sm:$0xff]
        %v1743 = vld [vmem:[%s1734 + $0x61] sm:$0xff]
        %v1744 = vld [vmem:[%s1734 + $0x69] sm:$0xff]
        %v1745 = vld [vmem:[%s1734 + $0x79] sm:$0xff]
        %v1746 = vld [vmem:[%s1734 + $0x81] sm:$0xff]
        %v1747 = vadd.f32 %v1674, %v1735
        %v1748 = vadd.f32 %v1679, %v1736
        %v1749 = vadd.f32 %v1684, %v1737
        %v1750 = vadd.f32 %v1689, %v1738
        %v1751 = vadd.f32 %v1694, %v1739
        %v1752 = vadd.f32 %v1699, %v1740
        %v1753 = vadd.f32 %v1704, %v1741
        %v1754 = vadd.f32 %v1709, %v1742
        %v1755 = vadd.f32 %v1714, %v1743
        %v1756 = vadd.f32 %v1719, %v1744
        %v1757 = vadd.f32 %v1724, %v1745
        %v1758 = vadd.f32 %v1729, %v1746
        %s1759 = smul.u32 %s409, 16
        %s1760 = scalar_lea.vmem %s406, %s1759 [#allocation12]
        %1761 = vst [vmem:[%s1760] sm:$0xff] %v1747
        %1762 = vst [vmem:[%s1760 + $0x8] sm:$0xff] %v1748
        %1763 = vst [vmem:[%s1760 + $0x10] sm:$0xff] %v1749
        %1764 = vst [vmem:[%s1760 + $0x18] sm:$0xff] %v1750
        %1765 = vst [vmem:[%s1760 + $0x20] sm:$0xff] %v1751
        %1766 = vst [vmem:[%s1760 + $0x28] sm:$0xff] %v1752
        %1767 = vst [vmem:[%s1760 + $0x30] sm:$0xff] %v1753
        %1768 = vst [vmem:[%s1760 + $0x38] sm:$0xff] %v1754
        %1769 = vst [vmem:[%s1760 + $0x40] sm:$0xff] %v1755
        %1770 = vst [vmem:[%s1760 + $0x48] sm:$0xff] %v1756
        %1771 = vst [vmem:[%s1760 + $0x50] sm:$0xff] %v1757
        %1772 = vst [vmem:[%s1760 + $0x58] sm:$0xff] %v1758
        %v1773 = vstv %s407
        %vm1774 = vcmp.ge.s32.totalorder %v701, %v1773
        %vm1775 = vcmp.ge.s32.totalorder %v702, %v1773
        %vm1776 = vcmp.ge.s32.totalorder %v703, %v1773
        %vm1777 = vcmp.ge.s32.totalorder %v704, %v1773
        %vm1778 = vcmp.ge.s32.totalorder %v705, %v1773
        %vm1779 = vcmp.ge.s32.totalorder %v706, %v1773
        %vm1780 = vcmp.lt.s32.totalorder %v710, 16
        %vm1781 = vcmp.lt.s32.totalorder %v711, 16
        %v1782 = vsel %vm1774, 1, 0
        %v1783 = vsel %vm1775, 1, 0
        %v1784 = vsel %vm1776, 1, 0
        %v1785 = vsel %vm1777, 1, 0
        %v1786 = vsel %vm1778, 1, 0
        %v1787 = vsel %vm1779, 1, 0
        %vm1788 = vcmp.eq.s32.totalorder %v1782, 1
        %vm1789 = vcmp.eq.s32.totalorder %v1783, 1
        %vm1790 = vcmp.eq.s32.totalorder %v1784, 1
        %vm1791 = vcmp.eq.s32.totalorder %v1785, 1
        %vm1792 = vcmp.eq.s32.totalorder %v1786, 1
        %vm1793 = vcmp.eq.s32.totalorder %v1787, 1
        %v1794 = vsel %vm1780, 1, 0
        %v1795 = vsel %vm1781, 1, 0
        %vm1796 = vcmp.eq.s32.totalorder %v1794, 1
        %vm1797 = vcmp.eq.s32.totalorder %v1795, 1
        %vm1798 = vmand %vm1788, %vm1796
        %vm1799 = vmand %vm1788, %vm1797
        %vm1800 = vmand %vm1789, %vm1796
        %vm1801 = vmand %vm1789, %vm1797
        %vm1802 = vmand %vm1790, %vm1796
        %vm1803 = vmand %vm1790, %vm1797
        %vm1804 = vmand %vm1791, %vm1796
        %vm1805 = vmand %vm1791, %vm1797
        %vm1806 = vmand %vm1792, %vm1796
        %vm1807 = vmand %vm1792, %vm1797
        %vm1808 = vmand %vm1793, %vm1796
        %vm1809 = vmand %vm1793, %vm1797
        %v1810 = vsel %vm1798, 1, 0
        %v1811 = vsel %vm1799, 1, 0
        %v1812 = vsel %vm1800, 1, 0
        %v1813 = vsel %vm1801, 1, 0
        %v1814 = vsel %vm1802, 1, 0
        %v1815 = vsel %vm1803, 1, 0
        %v1816 = vsel %vm1804, 1, 0
        %v1817 = vsel %vm1805, 1, 0
        %v1818 = vsel %vm1806, 1, 0
        %v1819 = vsel %vm1807, 1, 0
        %v1820 = vsel %vm1808, 1, 0
        %v1821 = vsel %vm1809, 1, 0
        %vm1822 = vcmp.eq.s32.totalorder %v1810, 1
        %vm1823 = vcmp.eq.s32.totalorder %v1811, 1
        %vm1824 = vcmp.eq.s32.totalorder %v1812, 1
        %vm1825 = vcmp.eq.s32.totalorder %v1813, 1
        %vm1826 = vcmp.eq.s32.totalorder %v1814, 1
        %vm1827 = vcmp.eq.s32.totalorder %v1815, 1
        %vm1828 = vcmp.eq.s32.totalorder %v1816, 1
        %vm1829 = vcmp.eq.s32.totalorder %v1817, 1
        %vm1830 = vcmp.eq.s32.totalorder %v1818, 1
        %vm1831 = vcmp.eq.s32.totalorder %v1819, 1
        %vm1832 = vcmp.eq.s32.totalorder %v1820, 1
        %vm1833 = vcmp.eq.s32.totalorder %v1821, 1
        %v1834 = vsel %vm1822, %v1747, 0.0
        %v1835 = vsel %vm1823, %v1748, 0.0
        %v1836 = vsel %vm1824, %v1749, 0.0
        %v1837 = vsel %vm1825, %v1750, 0.0
        %v1838 = vsel %vm1826, %v1751, 0.0
        %v1839 = vsel %vm1827, %v1752, 0.0
        %v1840 = vsel %vm1828, %v1753, 0.0
        %v1841 = vsel %vm1829, %v1754, 0.0
        %v1842 = vsel %vm1830, %v1755, 0.0
        %v1843 = vsel %vm1831, %v1756, 0.0
        %v1844 = vsel %vm1832, %v1757, 0.0
        %v1845 = vsel %vm1833, %v1758, 0.0
        %v1846 = vld [vmem:[#allocation2] sm:$0x1]
        %v1847 = vadd.f32 %v1834, %v1835
        %v1848 = vadd.f32 %v1847, %v1836
        %v1849 = vadd.f32 %v1848, %v1837
        %v1850 = vadd.f32 %v1849, %v1838
        %v1851 = vadd.f32 %v1850, %v1839
        %v1852 = vadd.f32 %v1851, %v1840
        %v1853 = vadd.f32 %v1852, %v1841
        %v1854 = vadd.f32 %v1853, %v1842
        %v1855 = vadd.f32 %v1854, %v1843
        %v1856 = vadd.f32 %v1855, %v1844
        %v1857 = vadd.f32 %v1856, %v1845
        %v1858 = vrot.slane %v1857, 4
        %v1859 = vadd.f32 %v1857, %v1858
        %v1860 = vrot.slane %v1859, 2
        %v1861 = vadd.f32 %v1859, %v1860
        %v1862 = vrot.slane %v1861, 1
        %v1863 = vadd.f32 %v1861, %v1862
        %v1864 = vadd.f32 %v1846, %v1863
        %1865 = vst [vmem:[#allocation2] sm:$0x1] %v1864
        %v1866 = vld [vmem:[#allocation3] sm:$0x1]
        %v1867 = vmul.f32 %v1834, %v1834
        %v1868 = vmul.f32 %v1835, %v1835
        %v1869 = vmul.f32 %v1836, %v1836
        %v1870 = vmul.f32 %v1837, %v1837
        %v1871 = vmul.f32 %v1838, %v1838
        %v1872 = vmul.f32 %v1839, %v1839
        %v1873 = vmul.f32 %v1840, %v1840
        %v1874 = vmul.f32 %v1841, %v1841
        %v1875 = vmul.f32 %v1842, %v1842
        %v1876 = vmul.f32 %v1843, %v1843
        %v1877 = vmul.f32 %v1844, %v1844
        %v1878 = vmul.f32 %v1845, %v1845
        %v1879 = vadd.f32 %v1867, %v1868
        %v1880 = vadd.f32 %v1879, %v1869
        %v1881 = vadd.f32 %v1880, %v1870
        %v1882 = vadd.f32 %v1881, %v1871
        %v1883 = vadd.f32 %v1882, %v1872
        %v1884 = vadd.f32 %v1883, %v1873
        %v1885 = vadd.f32 %v1884, %v1874
        %v1886 = vadd.f32 %v1885, %v1875
        %v1887 = vadd.f32 %v1886, %v1876
        %v1888 = vadd.f32 %v1887, %v1877
        %v1889 = vadd.f32 %v1888, %v1878
        %v1890 = vrot.slane %v1889, 4
        %v1891 = vadd.f32 %v1889, %v1890
        %v1892 = vrot.slane %v1891, 2
        %v1893 = vadd.f32 %v1891, %v1892
        %v1894 = vrot.slane %v1893, 1
        %v1895 = vadd.f32 %v1893, %v1894
        %v1896 = vadd.f32 %v1866, %v1895
        %1897 = vst [vmem:[#allocation3] sm:$0x1] %v1896
        %p1898 = scmp.eq.s32.totalorder %s33, 2
        // Predicated region
        $region77: #{tpu_custom_call.1} parent=55 // pred_check
          %p1899 = pneg %p1898
        $region78: #{tpu_custom_call.1} parent=55 // pred_check_branch
          %1901 = sbr.rel (%p1899) target = $region80
        $region79: #{tpu_custom_call.1} parent=55 // pred_region
          %v1902 = vld [vmem:[#allocation2] sm:$0x1]
          %v1903 = vrcp.pop 256.0
          %v1904 = vmul.f32 %v1902, %v1903
          %v1905 = vld [vmem:[#allocation3] sm:$0x1]
          %v1906 = vmul.f32 %v1905, %v1903
          %v1907 = vmul.f32 %v1904, %v1904
          %v1908 = vsub.f32 %v1906, %v1907
          %v1909 = vmax.f32 %v1908, 0.0
          %v1910 = vadd.f32 %v1909, 1e-05
          %v1911 = vrsqrt.pop %v1910
          %v1912 = vld [vmem:[%s7] sm:$0x1]
          %v1913 = vmul.f32 %v1911, %v1912
          %v1914 = vld [vmem:[%s8] sm:$0x1]
          %v1915 = vmul.f32 %v1904, %v1913
          %v1916 = vsub.f32 %v1914, %v1915
          loop: start=0, step=1, limit=16
          $region81: #{tpu_custom_call.1} parent=79 // loop_pre_header
            _
          $region82: #{tpu_custom_call.1} parent=79 // loop_header
            %s1918 = sphi 0, %s1922
            %p1919 = scmp.ge.s32.totalorder %s1918, 16
          $region83: #{tpu_custom_call.1} parent=79 // loop_header_branch
            %1921 = sbr.rel (%p1919) target = $region87
          $region84: #{tpu_custom_call.1} parent=79 // loop_body
            %s1923 = smul.u32 %s1918, 16
            %s1924 = scalar_lea.vmem %s406, %s1923 [#allocation12]
            %v1925 = vld [vmem:[%s1924] sm:$0xff]
            %v1926 = vld [vmem:[%s1924 + $0x8] sm:$0xff]
            %v1928 = vlaneseq
            %v1929 = vshrl.u32 %v1928, 7
            %v1930 = vsub.s32 0, %v1929
            %v1931 = vrot.slane %v1913, %v1930
            %v1933 = vmul.f32 %v1925, %v1931
            %v1934 = vmul.f32 %v1926, %v1931
            %v1936 = vlaneseq
            %v1937 = vshrl.u32 %v1936, 7
            %v1938 = vsub.s32 0, %v1937
            %v1939 = vrot.slane %v1916, %v1938
            %v1941 = vadd.f32 %v1933, %v1939
            %v1942 = vadd.f32 %v1934, %v1939
            %1943 = vst [vmem:[%s1924] sm:$0xff] %v1941
            %1944 = vst [vmem:[%s1924 + $0x8] sm:$0xff] %v1942
          $region85: #{tpu_custom_call.1} parent=79 // loop_footer
            %s1922 = sadd.s32 1, %s1918
          $region86: #{tpu_custom_call.1} parent=79 // loop_footer_branch
            %1917 = sbr.rel target = $region82
          $region87: #{tpu_custom_call.1} parent=79 // loop_exit
            _
        $region80: #{tpu_custom_call.1} parent=55 // pred_fallthru
          _
        %s1945 = sand.u32 %s242, 1
        %s1946 = scalar_lea.sflag [#allocation6], %s1945
        %s1947 = sand.u32 %s242, 1
        %s1948 = smul.addr %s1947, 256
        %s1949 = scalar_lea.vmem [#allocation12], %s1948
        // Predicated region
        $region88: #{tpu_custom_call.1} parent=55 // pred_check
          %p1950 = pneg %p252
        $region89: #{tpu_custom_call.1} parent=55 // pred_check_branch
          %1952 = sbr.rel (%p1950) target = $region91
        $region90: #{tpu_custom_call.1} parent=55 // pred_region
          %s1954 = ssub.s32 4096, 4096
          %1955 = vsyncadd %s1946, %s1954
          %s1956 = smul.addr %s32, 32
          %s1957 = smul.addr %s1956, 128
          %s1958 = scalar_lea.hbm %s9, %s1957
          %s1959 = sshll.u32 %s1949, 4
          %s1960 = int_to_ptr.vmem [resolvable:$true] %s1959
          %1965 = dma.vmem_to_hbm [thread:$0]  %s1960, 4096, %s1958, %s1946, 128, 128, 8
        $region91: #{tpu_custom_call.1} parent=55 // pred_fallthru
          _
      $region56: #{tpu_custom_call.1} parent=5 // pred_fallthru
        _
      %p1966 = scmp.le.s32.totalorder 2, %s23
      // Predicated region
      $region92: #{tpu_custom_call.1} parent=5 // pred_check
        %p1967 = pneg %p1966
      $region93: #{tpu_custom_call.1} parent=5 // pred_check_branch
        %1969 = sbr.rel (%p1967) target = $region95
      $region94: #{tpu_custom_call.1} parent=5 // pred_region
        %s1970 = ssub.s32 %s23, 2
        // Predicated region
        $region96: #{tpu_custom_call.1} parent=94 // pred_check
          %p1971 = pneg %p258
        $region97: #{tpu_custom_call.1} parent=94 // pred_check_branch
          %1973 = sbr.rel (%p1971) target = $region99
        $region98: #{tpu_custom_call.1} parent=94 // pred_region
          %s1974 = sand.u32 %s243, 1
          %s1975 = scalar_lea.sflag [#allocation6], %s1974
          %s1976 = sand.u32 %s243, 1
          %s1977 = smul.addr %s1976, 256
          %s1978 = scalar_lea.vmem [#allocation12], %s1977
          %1979 = dma.done %s1975, 4096
        $region99: #{tpu_custom_call.1} parent=94 // pred_fallthru
          _
      $region95: #{tpu_custom_call.1} parent=5 // pred_fallthru
        _
    $region6: #{tpu_custom_call.1} parent=1 // loop_footer
      %s27 = sadd.s32 1, %s23
    $region7: #{tpu_custom_call.1} parent=1 // loop_footer_branch
      %22 = sbr.rel target = $region3
    $region8: #{tpu_custom_call.1} parent=1 // loop_exit
      _
    %1980 = vsyncpa [#allocation5], 1
    %s1981 = scalar_lea.sflag [#allocation5], 1
    %1982 = vsyncpa %s1981, 1
    %1983 = vsyncpa [#allocation8], 1
    %1984 = vsyncpa [#allocation11], 1
    %1985 = vsyncpa [#allocation6], 1
    %s1986 = scalar_lea.sflag [#allocation6], 1
    %1987 = vsyncpa %s1986, 1

</llo_original>
